<compile_context>
chip_gen: v6e
topology: v6e:2x2x1
jax: 0.10.0
libtpu: 0.0.40
codegen_flags: <defaults>
</compile_context>

<pallas_src>
import functools

import jax
import jax.numpy as jnp
from jax.experimental import pallas as pl
from jax.experimental.pallas import tpu as pltpu


def _gated_attention_kernel(
    # inputs
    x_ref,      # (TILE_N, E)  bf16  -- streamed tile of instances
    wvu_ref,    # (E, 2H)      bf16  -- fused [Wv | Wu], resident
    bvu_ref,    # (1, 2H)      f32   -- fused [bv | bu], resident
    ww_ref,     # (1, H)       f32   -- Ww^T (K == 1), resident
    wc_ref,     # (1, E)       f32   -- Wc^T (classifier), resident
    bwbc_ref,   # (2,)         f32   -- [bw, bc], SMEM resident
    # outputs
    a_ref,      # (num_tiles, TILE_N) f32 -- resident; p per tile, normalized A at end
    yprob_ref,  # (1, 1) f32
    yhat_ref,   # (1, 1) f32
    # scratch
    m_sc,       # (1, 1) f32  running max
    s_sc,       # (1, 1) f32  running sum of exp
    z_sc,       # (1, E) f32  rescaled (unnormalized) attention-pooled embedding
    mt_sc,      # (num_tiles, 1) f32  per-tile max snapshot (for the finalize rescale)
    *,
    n_valid,    # actual number of instances (static)
    mask_tail,  # static bool: True iff the last tile is ragged
):
    i = pl.program_id(0)
    tile_n = x_ref.shape[0]
    h = wvu_ref.shape[1] // 2

    @pl.when(i == 0)
    def _init():
        m_sc[...] = jnp.full_like(m_sc, -1e30)
        s_sc[...] = jnp.zeros_like(s_sc)
        z_sc[...] = jnp.zeros_like(z_sc)

    x_bf = x_ref[...]                                          # (TILE_N, E) bf16
    if mask_tail:
        # zero-mask rows past the bag: the ragged last block streams garbage
        # from HBM and 0*NaN in the p@x matmul would otherwise poison z_sc.
        row_ids_col = i * tile_n + jax.lax.broadcasted_iota(
            jnp.int32, (tile_n, 1), 0)
        x_bf = jnp.where(row_ids_col < n_valid, x_bf, jnp.zeros_like(x_bf))

    # fused V/U projection: one bf16 MXU pass sharing the x tile
    vu = jnp.dot(x_bf, wvu_ref[...],
                 preferred_element_type=jnp.float32) + bvu_ref[...]   # (TILE_N, 2H)
    gated = jnp.tanh(vu[:, :h]) * jax.nn.sigmoid(vu[:, h:])           # (TILE_N, H)

    # attention logits as a lane-dense row (1, TILE_N); contract on the last
    # dims of both operands so no gated.T transpose/copy is materialized.
    bw = bwbc_ref[0]
    logits = jax.lax.dot_general(
        ww_ref[...], gated,
        dimension_numbers=(((1,), (1,)), ((), ())),
        preferred_element_type=jnp.float32) + bw                       # (1, TILE_N)

    if mask_tail:
        row_ids_lane = i * tile_n + jax.lax.broadcasted_iota(
            jnp.int32, (1, tile_n), 1)
        logits = jnp.where(row_ids_lane < n_valid, logits, jnp.float32(-1e30))

    # online softmax update + rescaled Z accumulation (all-bf16 MXU operands)
    m_prev = m_sc[...]                                          # (1, 1)
    m_new = jnp.maximum(m_prev, jnp.max(logits, axis=1, keepdims=True))
    alpha = jnp.exp(m_prev - m_new)                             # (1, 1)
    p = jnp.exp(logits - m_new)                                 # (1, TILE_N) f32
    s_sc[...] = s_sc[...] * alpha + jnp.sum(p, axis=1, keepdims=True)
    z_sc[...] = z_sc[...] * alpha + jnp.dot(
        p.astype(jnp.bfloat16), x_bf, preferred_element_type=jnp.float32)
    m_sc[...] = m_new

    # stash p and this tile's max; finalize rescales instead of re-exponentiating
    a_ref[pl.ds(i, 1), :] = p
    mt_sc[pl.ds(i, 1), :] = m_new

    @pl.when(i == pl.num_programs(0) - 1)
    def _finalize():
        inv_s = 1.0 / s_sc[...]                                 # exact; runs once
        m_final = m_sc[...]
        # normalized attention over all instances (padded entries stay 0)
        a_ref[...] = a_ref[...] * (jnp.exp(mt_sc[...] - m_final) * inv_s)
        # pooled bag embedding + classifier (K == 1): VPU multiply + lane reduce
        z = z_sc[...] * inv_s                                   # (1, E)
        cls = jnp.sum(z * wc_ref[...], axis=1, keepdims=True) + bwbc_ref[1]
        y_prob = jax.nn.sigmoid(cls)
        yprob_ref[...] = y_prob
        yhat_ref[...] = (y_prob >= 0.5).astype(jnp.float32)


def gated_attention_forward(x, params, *, tile_n=1024):
    """x: (1, N, E) or (N, E). Returns (Y_prob (1,1), Y_hat (1,1), A (1, N))."""
    if x.ndim == 3:
        x = x[0]                       # == x.squeeze(0)
    N, E = x.shape
    H = params["wv"].shape[1]
    K = params["ww"].shape[1]
    assert K == 1, "GatedAttention classifier is only well-defined for ATTENTION_BRANCHES == 1"

    # bf16 x stream (halves HBM traffic); no wrapper-side pad — ragged last
    # tile is handled in-kernel.
    x_bf = x if x.dtype == jnp.bfloat16 else x.astype(jnp.bfloat16)

    # effective tile: whole bag if it fits in one step, otherwise a multiple of
    # 8 that never exceeds the instance count (keeps block_shape legal without
    # padding x in HBM).
    if tile_n >= N:
        tile_n_eff = N
    else:
        tile_n_eff = max(8, (tile_n // 8) * 8)
        if tile_n_eff > N:
            tile_n_eff = N
    num_tiles = pl.cdiv(N, tile_n_eff)
    ragged = (N % tile_n_eff) != 0

    # fuse V/U projections; small weights in MXU/VPU-friendly layouts
    w_vu = jnp.concatenate([params["wv"], params["wu"]], axis=1).astype(jnp.bfloat16)  # (E, 2H)
    b_vu = jnp.concatenate([params["bv"], params["bu"]], axis=1)                        # (1, 2H)
    ww_row = params["ww"].T            # (1, H)
    wc_row = params["wc"].T            # (1, E)
    bwbc = jnp.concatenate(
        [params["bw"].reshape(-1), params["bc"].reshape(-1)]).astype(jnp.float32)       # (2,)

    kernel = functools.partial(_gated_attention_kernel, n_valid=N, mask_tail=ragged)

    grid_spec = pltpu.PrefetchScalarGridSpec(
        num_scalar_prefetch=0,
        grid=(num_tiles,),
        in_specs=[
            pl.BlockSpec((tile_n_eff, E), lambda i: (i, 0)),      # x tile (streamed)
            pl.BlockSpec((E, 2 * H), lambda i: (0, 0)),           # fused Wv|Wu (resident)
            pl.BlockSpec((1, 2 * H), lambda i: (0, 0)),           # fused bv|bu
            pl.BlockSpec((1, H), lambda i: (0, 0)),               # Ww^T
            pl.BlockSpec((1, E), lambda i: (0, 0)),               # Wc^T
            pl.BlockSpec(memory_space=pltpu.MemorySpace.SMEM),    # [bw, bc] scalars
        ],
        out_specs=[
            pl.BlockSpec((num_tiles, tile_n_eff), lambda i: (0, 0)),  # A (resident accumulator)
            pl.BlockSpec((1, 1), lambda i: (0, 0)),                   # Y_prob
            pl.BlockSpec((1, 1), lambda i: (0, 0)),                   # Y_hat
        ],
        scratch_shapes=[
            pltpu.VMEM((1, 1), jnp.float32),           # running max m
            pltpu.VMEM((1, 1), jnp.float32),           # running sum s
            pltpu.VMEM((1, E), jnp.float32),           # Z accumulator
            pltpu.VMEM((num_tiles, 1), jnp.float32),   # per-tile max snapshots
        ],
    )

    a_tiles, y_prob, y_hat = pl.pallas_call(
        kernel,
        out_shape=(
            jax.ShapeDtypeStruct((num_tiles, tile_n_eff), jnp.float32),
            jax.ShapeDtypeStruct((1, 1), jnp.float32),
            jax.ShapeDtypeStruct((1, 1), jnp.float32),
        ),
        grid_spec=grid_spec,
        compiler_params=pltpu.CompilerParams(
            dimension_semantics=("arbitrary",),   # N axis carries the softmax/Z accumulators
        ),
    )(x_bf, w_vu, b_vu, ww_row, wc_row, bwbc)

    attn = a_tiles.reshape(1, num_tiles * tile_n_eff)[:, :N]   # (K=1, N) lane-dense
    return y_prob, y_hat, attn


def init_params(key, embed_size, hidden_size, attention_branches=1):
    """Deterministic uniform init (PyTorch-Linear style bounds), weights stored
    as [in_features, out_features]. Wv/Wu are rounded to bf16-representable
    values so the in-kernel bf16 cast is lossless."""
    ks = jax.random.split(key, 8)

    def lin(kw, kb, fan_in, fan_out, bf16_weights=False):
        bound = 1.0 / jnp.sqrt(fan_in)
        w = jax.random.uniform(kw, (fan_in, fan_out), jnp.float32, -bound, bound)
        if bf16_weights:
            w = w.astype(jnp.bfloat16).astype(jnp.float32)
        b = jax.random.uniform(kb, (1, fan_out), jnp.float32, -bound, bound)
        return w, b

    wv, bv = lin(ks[0], ks[1], embed_size, hidden_size, bf16_weights=True)
    wu, bu = lin(ks[2], ks[3], embed_size, hidden_size, bf16_weights=True)
    ww, bw = lin(ks[4], ks[5], hidden_size, attention_branches)
    wc, bc = lin(ks[6], ks[7], embed_size * attention_branches, 1)
    return dict(wv=wv, bv=bv, wu=wu, bu=bu, ww=ww, bw=bw, wc=wc, bc=bc)


def _reference_forward(x, p):
    """Pure-JAX f32 reference for a correctness check."""
    if x.ndim == 3:
        x = x[0]
    x32 = x.astype(jnp.float32)
    a_v = jnp.tanh(x32 @ p["wv"] + p["bv"])
    a_u = jax.nn.sigmoid(x32 @ p["wu"] + p["bu"])
    a = (a_v * a_u) @ p["ww"] + p["bw"]          # (N, K)
    a = jax.nn.softmax(a.T, axis=1)              # (K, N)
    z = a @ x32                                  # (K, E)
    y_prob = jax.nn.sigmoid(z @ p["wc"] + p["bc"])
    y_hat = (y_prob >= 0.5).astype(jnp.float32)
    return y_prob, y_hat, a


if __name__ == "__main__":
    # Small, module-consistent shapes: bag of N=300 instances, embed=256, hidden=128, K=1.
    N, E, H, K = 300, 256, 128, 1

    key = jax.random.PRNGKey(0)
    k_x, k_p = jax.random.split(key)
    x = jax.random.normal(k_x, (1, N, E), dtype=jnp.float32).astype(jnp.bfloat16)  # (batch=1, N, E)
    params = init_params(k_p, E, H, K)

    ry, rh, ra = _reference_forward(x, params)

    def check(y_prob, y_hat, attn):
        assert y_prob.shape == (K, 1) and y_hat.shape == (K, 1) and attn.shape == (K, N)
        assert jnp.allclose(y_prob, ry, atol=2e-3), "Y_prob mismatch"
        assert jnp.allclose(attn, ra, atol=1e-4), "A mismatch"
        assert abs(float(jnp.sum(attn)) - 1.0) < 2e-3, "A does not sum to 1"
        assert jnp.array_equal(y_hat, (y_prob >= 0.5).astype(jnp.float32)), "Y_hat inconsistent"

    # 1) default path: whole bag processed in a single grid step (tile_n >= N)
    y_prob, y_hat, attn = gated_attention_forward(x, params)
    jax.block_until_ready((y_prob, y_hat, attn))
    check(y_prob, y_hat, attn)

    # 2) multi-tile path with a ragged last tile (exercises in-kernel masking
    #    and the online-softmax / per-tile-max finalize)
    y_prob2, y_hat2, attn2 = gated_attention_forward(x, params, tile_n=128)
    jax.block_until_ready((y_prob2, y_hat2, attn2))
    check(y_prob2, y_hat2, attn2)

    print("KERNEL_OK")
</pallas_src>

<mosaic_0001>
module attributes {stable_mosaic.version = 11 : i64} {
  func.func @_gated_attention_kernel(%arg0: i32, %arg1: memref<300x256xbf16, #tpu.memory_space<vmem>>, %arg2: memref<256x256xbf16, #tpu.memory_space<vmem>>, %arg3: memref<1x256xf32, #tpu.memory_space<vmem>>, %arg4: memref<1x128xf32, #tpu.memory_space<vmem>>, %arg5: memref<1x256xf32, #tpu.memory_space<vmem>>, %arg6: memref<2xf32, #tpu.memory_space<smem>>, %arg7: memref<1x300xf32, #tpu.memory_space<vmem>>, %arg8: memref<1x1xf32, #tpu.memory_space<vmem>>, %arg9: memref<1x1xf32, #tpu.memory_space<vmem>>, %arg10: memref<1x1xf32, #tpu.memory_space<vmem>>, %arg11: memref<1x1xf32, #tpu.memory_space<vmem>>, %arg12: memref<1x256xf32, #tpu.memory_space<vmem>>, %arg13: memref<1x1xf32, #tpu.memory_space<vmem>>) attributes {dimension_semantics = [#tpu.dimension_semantics<arbitrary>], iteration_bounds = array<i64: 1>, scalar_prefetch = 0 : i64, scratch_operands = 4 : i64, tpu.core_type = #tpu.core_type<tc>, window_params = [{transform_indices = @transform_0, window_bounds = array<i64: 300, 256>}, {pipeline_mode = #tpu.pipeline_mode<synchronous>, transform_indices = @transform_1, window_bounds = array<i64: 256, 256>}, {pipeline_mode = #tpu.pipeline_mode<synchronous>, transform_indices = @transform_2, window_bounds = array<i64: 1, 256>}, {pipeline_mode = #tpu.pipeline_mode<synchronous>, transform_indices = @transform_3, window_bounds = array<i64: 1, 128>}, {pipeline_mode = #tpu.pipeline_mode<synchronous>, transform_indices = @transform_4, window_bounds = array<i64: 1, 256>}, {transform_indices = @transform_5, window_bounds = array<i64: 2>}, {pipeline_mode = #tpu.pipeline_mode<synchronous>, transform_indices = @transform_6, window_bounds = array<i64: 1, 300>}, {pipeline_mode = #tpu.pipeline_mode<synchronous>, transform_indices = @transform_7, window_bounds = array<i64: 1, 1>}, {pipeline_mode = #tpu.pipeline_mode<synchronous>, transform_indices = @transform_8, window_bounds = array<i64: 1, 1>}]} {
    %c0_i32 = arith.constant 0 : i32
    %0 = arith.cmpi eq, %arg0, %c0_i32 : i32
    %1 = arith.extui %0 : i1 to i32
    %c0_i32_0 = arith.constant 0 : i32
    %2 = arith.cmpi ne, %1, %c0_i32_0 : i32
    scf.if %2 {
      %cst_30 = arith.constant -1.000000e+30 : f32
      %53 = vector.broadcast %cst_30 : f32 to vector<1x1xf32>
      %c0_31 = arith.constant 0 : index
      %c0_32 = arith.constant 0 : index
      %54 = vector.load %arg10[%c0_31, %c0_32] : memref<1x1xf32, #tpu.memory_space<vmem>>, vector<1x1xf32>
      tpu.vector_store %arg10[%c0_31, %c0_32], %53 {strides = array<i32>} : memref<1x1xf32, #tpu.memory_space<vmem>>, vector<1x1xf32>,
      %cst_33 = arith.constant 0.000000e+00 : f32
      %55 = vector.broadcast %cst_33 : f32 to vector<1x1xf32>
      %c0_34 = arith.constant 0 : index
      %c0_35 = arith.constant 0 : index
      %56 = vector.load %arg11[%c0_34, %c0_35] : memref<1x1xf32, #tpu.memory_space<vmem>>, vector<1x1xf32>
      tpu.vector_store %arg11[%c0_34, %c0_35], %55 {strides = array<i32>} : memref<1x1xf32, #tpu.memory_space<vmem>>, vector<1x1xf32>,
      %cst_36 = arith.constant 0.000000e+00 : f32
      %57 = vector.broadcast %cst_36 : f32 to vector<1x256xf32>
      %c0_37 = arith.constant 0 : index
      %c0_38 = arith.constant 0 : index
      %58 = vector.load %arg12[%c0_37, %c0_38] : memref<1x256xf32, #tpu.memory_space<vmem>>, vector<1x256xf32>
      tpu.vector_store %arg12[%c0_37, %c0_38], %57 {strides = array<i32>} : memref<1x256xf32, #tpu.memory_space<vmem>>, vector<1x256xf32>,
    } else {
    }
    %c0 = arith.constant 0 : index
    %c0_1 = arith.constant 0 : index
    %3 = vector.load %arg1[%c0, %c0_1] : memref<300x256xbf16, #tpu.memory_space<vmem>>, vector<300x256xbf16>
    %c0_2 = arith.constant 0 : index
    %c0_3 = arith.constant 0 : index
    %4 = vector.load %arg2[%c0_2, %c0_3] : memref<256x256xbf16, #tpu.memory_space<vmem>>, vector<256x256xbf16>
    %cst = arith.constant dense<0.000000e+00> : vector<300x256xf32>
    %5 = tpu.matmul %3, %4, %cst {dimension_numbers = #tpu.dot_dimension_numbers<[1], [0], [0], [1], [0, 0, 1, 1], [], []>} : vector<300x256xbf16>, vector<256x256xbf16>, vector<300x256xf32> -> vector<300x256xf32>
    %c0_4 = arith.constant 0 : index
    %c0_5 = arith.constant 0 : index
    %6 = vector.load %arg3[%c0_4, %c0_5] : memref<1x256xf32, #tpu.memory_space<vmem>>, vector<1x256xf32>
    %7 = vector.broadcast %6 : vector<1x256xf32> to vector<300x256xf32>
    %8 = arith.addf %5, %7 : vector<300x256xf32>
    %9 = vector.extract_strided_slice %8 {offsets = [0, 0], sizes = [300, 128], strides = [1, 1]} : vector<300x256xf32> to vector<300x128xf32>
    %10 = math.tanh %9 : vector<300x128xf32>
    %11 = vector.extract_strided_slice %8 {offsets = [0, 128], sizes = [300, 128], strides = [1, 1]} : vector<300x256xf32> to vector<300x128xf32>
    %12 = arith.negf %11 : vector<300x128xf32>
    %13 = math.exp %12 : vector<300x128xf32>
    %cst_6 = arith.constant 1.000000e+00 : f32
    %14 = vector.broadcast %cst_6 : f32 to vector<300x128xf32>
    %15 = arith.addf %14, %13 : vector<300x128xf32>
    %16 = arith.divf %14, %15 : vector<300x128xf32>
    %17 = arith.mulf %10, %16 : vector<300x128xf32>
    %c0_7 = arith.constant 0 : index
    %18 = memref.load %arg6[%c0_7] : memref<2xf32, #tpu.memory_space<smem>>
    %c0_8 = arith.constant 0 : index
    %c0_9 = arith.constant 0 : index
    %19 = vector.load %arg4[%c0_8, %c0_9] : memref<1x128xf32, #tpu.memory_space<vmem>>, vector<1x128xf32>
    %cst_10 = arith.constant dense<0.000000e+00> : vector<1x300xf32>
    %20 = tpu.matmul %19, %17, %cst_10 {dimension_numbers = #tpu.dot_dimension_numbers<[1], [1], [0], [0], [0, 0, 1, 0], [], []>} : vector<1x128xf32>, vector<300x128xf32>, vector<1x300xf32> -> vector<1x300xf32>
    %21 = vector.broadcast %18 : f32 to vector<1x300xf32>
    %22 = arith.addf %20, %21 : vector<1x300xf32>
    %c0_11 = arith.constant 0 : index
    %c0_12 = arith.constant 0 : index
    %23 = vector.load %arg10[%c0_11, %c0_12] : memref<1x1xf32, #tpu.memory_space<vmem>>, vector<1x1xf32>
    %cst_13 = arith.constant dense<0xFF800000> : vector<1xf32>
    %24 = vector.multi_reduction <maximumf>, %22, %cst_13 [1] : vector<1x300xf32> to vector<1xf32>
    %25 = vector.shape_cast %24 : vector<1xf32> to vector<1x1xf32>
    %26 = arith.maximumf %23, %25 : vector<1x1xf32>
    %27 = arith.subf %23, %26 : vector<1x1xf32>
    %28 = math.exp %27 : vector<1x1xf32>
    %29 = vector.broadcast %26 : vector<1x1xf32> to vector<1x300xf32>
    %30 = arith.subf %22, %29 : vector<1x300xf32>
    %31 = math.exp %30 : vector<1x300xf32>
    %c0_14 = arith.constant 0 : index
    %c0_15 = arith.constant 0 : index
    %32 = vector.load %arg11[%c0_14, %c0_15] : memref<1x1xf32, #tpu.memory_space<vmem>>, vector<1x1xf32>
    %33 = arith.mulf %32, %28 : vector<1x1xf32>
    %cst_16 = arith.constant dense<0.000000e+00> : vector<1xf32>
    %34 = vector.multi_reduction <add>, %31, %cst_16 [1] : vector<1x300xf32> to vector<1xf32>
    %35 = vector.shape_cast %34 : vector<1xf32> to vector<1x1xf32>
    %36 = arith.addf %33, %35 : vector<1x1xf32>
    %c0_17 = arith.constant 0 : index
    %c0_18 = arith.constant 0 : index
    %37 = vector.load %arg11[%c0_17, %c0_18] : memref<1x1xf32, #tpu.memory_space<vmem>>, vector<1x1xf32>
    tpu.vector_store %arg11[%c0_17, %c0_18], %36 {strides = array<i32>} : memref<1x1xf32, #tpu.memory_space<vmem>>, vector<1x1xf32>,
    %c0_19 = arith.constant 0 : index
    %c0_20 = arith.constant 0 : index
    %38 = vector.load %arg12[%c0_19, %c0_20] : memref<1x256xf32, #tpu.memory_space<vmem>>, vector<1x256xf32>
    %39 = vector.broadcast %28 : vector<1x1xf32> to vector<1x256xf32>
    %40 = arith.mulf %38, %39 : vector<1x256xf32>
    %41 = arith.truncf %31 : vector<1x300xf32> to vector<1x300xbf16>
    %cst_21 = arith.constant dense<0.000000e+00> : vector<1x256xf32>
    %42 = tpu.matmul %41, %3, %cst_21 {dimension_numbers = #tpu.dot_dimension_numbers<[1], [0], [0], [1], [0, 0, 1, 1], [], []>} : vector<1x300xbf16>, vector<300x256xbf16>, vector<1x256xf32> -> vector<1x256xf32>
    %43 = arith.addf %40, %42 : vector<1x256xf32>
    %c0_22 = arith.constant 0 : index
    %c0_23 = arith.constant 0 : index
    %44 = vector.load %arg12[%c0_22, %c0_23] : memref<1x256xf32, #tpu.memory_space<vmem>>, vector<1x256xf32>
    tpu.vector_store %arg12[%c0_22, %c0_23], %43 {strides = array<i32>} : memref<1x256xf32, #tpu.memory_space<vmem>>, vector<1x256xf32>,
    %c0_24 = arith.constant 0 : index
    %c0_25 = arith.constant 0 : index
    %45 = vector.load %arg10[%c0_24, %c0_25] : memref<1x1xf32, #tpu.memory_space<vmem>>, vector<1x1xf32>
    tpu.vector_store %arg10[%c0_24, %c0_25], %26 {strides = array<i32>} : memref<1x1xf32, #tpu.memory_space<vmem>>, vector<1x1xf32>,
    %46 = arith.index_cast %arg0 : i32 to index
    %c0_26 = arith.constant 0 : index
    %47 = vector.load %arg7[%46, %c0_26] : memref<1x300xf32, #tpu.memory_space<vmem>>, vector<1x300xf32>
    tpu.vector_store %arg7[%46, %c0_26], %31 {strides = array<i32>} : memref<1x300xf32, #tpu.memory_space<vmem>>, vector<1x300xf32>,
    %48 = arith.index_cast %arg0 : i32 to index
    %c0_27 = arith.constant 0 : index
    %49 = vector.load %arg13[%48, %c0_27] : memref<1x1xf32, #tpu.memory_space<vmem>>, vector<1x1xf32>
    tpu.vector_store %arg13[%48, %c0_27], %26 {strides = array<i32>} : memref<1x1xf32, #tpu.memory_space<vmem>>, vector<1x1xf32>,
    %c0_i32_28 = arith.constant 0 : i32
    %50 = arith.cmpi eq, %arg0, %c0_i32_28 : i32
    %51 = arith.extui %50 : i1 to i32
    %c0_i32_29 = arith.constant 0 : i32
    %52 = arith.cmpi ne, %51, %c0_i32_29 : i32
    scf.if %52 {
      %c0_30 = arith.constant 0 : index
      %c0_31 = arith.constant 0 : index
      %53 = vector.load %arg11[%c0_30, %c0_31] : memref<1x1xf32, #tpu.memory_space<vmem>>, vector<1x1xf32>
      %cst_32 = arith.constant 1.000000e+00 : f32
      %54 = vector.broadcast %cst_32 : f32 to vector<1x1xf32>
      %55 = arith.divf %54, %53 : vector<1x1xf32>
      %c0_33 = arith.constant 0 : index
      %c0_34 = arith.constant 0 : index
      %56 = vector.load %arg10[%c0_33, %c0_34] : memref<1x1xf32, #tpu.memory_space<vmem>>, vector<1x1xf32>
      %c0_35 = arith.constant 0 : index
      %c0_36 = arith.constant 0 : index
      %57 = vector.load %arg7[%c0_35, %c0_36] : memref<1x300xf32, #tpu.memory_space<vmem>>, vector<1x300xf32>
      %c0_37 = arith.constant 0 : index
      %c0_38 = arith.constant 0 : index
      %58 = vector.load %arg13[%c0_37, %c0_38] : memref<1x1xf32, #tpu.memory_space<vmem>>, vector<1x1xf32>
      %59 = arith.subf %58, %56 : vector<1x1xf32>
      %60 = math.exp %59 : vector<1x1xf32>
      %61 = arith.mulf %60, %55 : vector<1x1xf32>
      %62 = vector.broadcast %61 : vector<1x1xf32> to vector<1x300xf32>
      %63 = arith.mulf %57, %62 : vector<1x300xf32>
      %c0_39 = arith.constant 0 : index
      %c0_40 = arith.constant 0 : index
      %64 = vector.load %arg7[%c0_39, %c0_40] : memref<1x300xf32, #tpu.memory_space<vmem>>, vector<1x300xf32>
      tpu.vector_store %arg7[%c0_39, %c0_40], %63 {strides = array<i32>} : memref<1x300xf32, #tpu.memory_space<vmem>>, vector<1x300xf32>,
      %c0_41 = arith.constant 0 : index
      %c0_42 = arith.constant 0 : index
      %65 = vector.load %arg12[%c0_41, %c0_42] : memref<1x256xf32, #tpu.memory_space<vmem>>, vector<1x256xf32>
      %66 = vector.broadcast %55 : vector<1x1xf32> to vector<1x256xf32>
      %67 = arith.mulf %65, %66 : vector<1x256xf32>
      %c0_43 = arith.constant 0 : index
      %c0_44 = arith.constant 0 : index
      %68 = vector.load %arg5[%c0_43, %c0_44] : memref<1x256xf32, #tpu.memory_space<vmem>>, vector<1x256xf32>
      %69 = arith.mulf %67, %68 : vector<1x256xf32>
      %cst_45 = arith.constant dense<0.000000e+00> : vector<1xf32>
      %70 = vector.multi_reduction <add>, %69, %cst_45 [1] : vector<1x256xf32> to vector<1xf32>
      %71 = vector.shape_cast %70 : vector<1xf32> to vector<1x1xf32>
      %c1 = arith.constant 1 : index
      %72 = memref.load %arg6[%c1] : memref<2xf32, #tpu.memory_space<smem>>
      %73 = vector.broadcast %72 : f32 to vector<1x1xf32>
      %74 = arith.addf %71, %73 : vector<1x1xf32>
      %75 = arith.negf %74 : vector<1x1xf32>
      %76 = math.exp %75 : vector<1x1xf32>
      %cst_46 = arith.constant 1.000000e+00 : f32
      %77 = vector.broadcast %cst_46 : f32 to vector<1x1xf32>
      %78 = arith.addf %77, %76 : vector<1x1xf32>
      %79 = arith.divf %77, %78 : vector<1x1xf32>
      %c0_47 = arith.constant 0 : index
      %c0_48 = arith.constant 0 : index
      %80 = vector.load %arg8[%c0_47, %c0_48] : memref<1x1xf32, #tpu.memory_space<vmem>>, vector<1x1xf32>
      tpu.vector_store %arg8[%c0_47, %c0_48], %79 {strides = array<i32>} : memref<1x1xf32, #tpu.memory_space<vmem>>, vector<1x1xf32>,
      %cst_49 = arith.constant 5.000000e-01 : f32
      %81 = vector.broadcast %cst_49 : f32 to vector<1x1xf32>
      %82 = arith.cmpf oge, %79, %81 : vector<1x1xf32>
      %83 = arith.extui %82 : vector<1x1xi1> to vector<1x1xi32>
      %84 = arith.sitofp %83 : vector<1x1xi32> to vector<1x1xf32>
      %c0_50 = arith.constant 0 : index
      %c0_51 = arith.constant 0 : index
      %85 = vector.load %arg9[%c0_50, %c0_51] : memref<1x1xf32, #tpu.memory_space<vmem>>, vector<1x1xf32>
      tpu.vector_store %arg9[%c0_50, %c0_51], %84 {strides = array<i32>} : memref<1x1xf32, #tpu.memory_space<vmem>>, vector<1x1xf32>,
    } else {
    }
    return
  }
  func.func @transform_0(%arg0: i32) -> (i32, i32) {
    %c0_i32 = arith.constant 0 : i32
    %c0_i32_0 = arith.constant 0 : i32
    return %arg0, %c0_i32 : i32, i32
  }
  func.func @transform_1(%arg0: i32) -> (i32, i32) {
    %c0_i32 = arith.constant 0 : i32
    %c0_i32_0 = arith.constant 0 : i32
    %c0_i32_1 = arith.constant 0 : i32
    return %c0_i32, %c0_i32_0 : i32, i32
  }
  func.func @transform_2(%arg0: i32) -> (i32, i32) {
    %c0_i32 = arith.constant 0 : i32
    %c0_i32_0 = arith.constant 0 : i32
    %c0_i32_1 = arith.constant 0 : i32
    return %c0_i32, %c0_i32_0 : i32, i32
  }
  func.func @transform_3(%arg0: i32) -> (i32, i32) {
    %c0_i32 = arith.constant 0 : i32
    %c0_i32_0 = arith.constant 0 : i32
    %c0_i32_1 = arith.constant 0 : i32
    return %c0_i32, %c0_i32_0 : i32, i32
  }
  func.func @transform_4(%arg0: i32) -> (i32, i32) {
    %c0_i32 = arith.constant 0 : i32
    %c0_i32_0 = arith.constant 0 : i32
    %c0_i32_1 = arith.constant 0 : i32
    return %c0_i32, %c0_i32_0 : i32, i32
  }
  func.func @transform_5(%arg0: i32) -> i32 {
    %c0_i32 = arith.constant 0 : i32
    %c0_i32_0 = arith.constant 0 : i32
    return %c0_i32 : i32
  }
  func.func @transform_6(%arg0: i32) -> (i32, i32) {
    %c0_i32 = arith.constant 0 : i32
    %c0_i32_0 = arith.constant 0 : i32
    %c0_i32_1 = arith.constant 0 : i32
    return %c0_i32, %c0_i32_0 : i32, i32
  }
  func.func @transform_7(%arg0: i32) -> (i32, i32) {
    %c0_i32 = arith.constant 0 : i32
    %c0_i32_0 = arith.constant 0 : i32
    %c0_i32_1 = arith.constant 0 : i32
    return %c0_i32, %c0_i32_0 : i32, i32
  }
  func.func @transform_8(%arg0: i32) -> (i32, i32) {
    %c0_i32 = arith.constant 0 : i32
    %c0_i32_0 = arith.constant 0 : i32
    %c0_i32_1 = arith.constant 0 : i32
    return %c0_i32, %c0_i32_0 : i32, i32
  }
}

</mosaic_0001>

<llo_original>
// kernel: tpu_custom_call.1
$region0: #{tpu_custom_call.1}
  #allocation0 [shape = 'u32[]', space=smem, size = 0x4, offset = 0x4, fixed_abs, tag = 'smem constant byte address 0x4 - core index']
  #allocation1 [shape = 'u32[144,128]{1,0:T(1,128)}', space=vmem, size = 0x12000, scoped, tag = 'internal scratch']
  #allocation2 [shape = 'f32[1,1]{1,0:T(1,128)}', space=vmem, size = 0x200, scoped, tag = 'scratch operand']
  #allocation3 [shape = 'f32[1,1]{1,0:T(1,128)}', space=vmem, size = 0x200, scoped, tag = 'scratch operand']
  #allocation4 [shape = 'f32[1,256]{1,0:T(1,128)}', space=vmem, size = 0x400, scoped, tag = 'scratch operand']
  #allocation5 [shape = 'f32[1,1]{1,0:T(1,128)}', space=vmem, size = 0x200, scoped, tag = 'scratch operand']
  %s0 = inlined_call_operand.hbm [shape: bf16[300,256], index: 0, kind: input, shape index: {}]
  %s1 = inlined_call_operand.hbm [shape: bf16[256,256], index: 1, kind: input, shape index: {}]
  %s2 = inlined_call_operand.vmem [shape: f32[1,256], index: 2, kind: input, shape index: {}]
  %s3 = inlined_call_operand.vmem [shape: f32[1,128], index: 3, kind: input, shape index: {}]
  %s4 = inlined_call_operand.vmem [shape: f32[1,256], index: 4, kind: input, shape index: {}]
  %s5 = inlined_call_operand.vmem [shape: f32[2], index: 5, kind: input, shape index: {}]
  %s6 = inlined_call_operand.hbm [shape: f32[1,300], index: 6, kind: output, shape index: {0}]
  %s7 = inlined_call_operand.hbm [shape: f32[1,1], index: 7, kind: output, shape index: {1}]
  %s8 = inlined_call_operand.hbm [shape: f32[1,1], index: 8, kind: output, shape index: {2}]
  %9 = xla_tuple %s6, %s7, %s8
  %s10 = sld [smem:[#allocation0]]
  $region70: #{tpu_custom_call.1} parent=0
    _
  %s12 = ssub.s32 1, %s10
  %s13 = scalar_select 0, %s12, %s10
  $region1: #{tpu_custom_call.1} parent=0
    #allocation6 [shape = 'u8[155648]{0}', space=vmem, size = 0x26000, scoped, tag = 'input window, operand 0, single buffered']
    #allocation7 [shape = 's32[1]{0}', space=sflag, size = 0x4, scoped, tag = 'scoped memory for tpu_custom_call.1']
    #allocation8 [shape = 's32[1]{0}', space=sflag, size = 0x4, scoped, tag = 'scoped memory for tpu_custom_call.1']
    #allocation9 [shape = 's32[1]{0}', space=sflag, size = 0x4, scoped, tag = 'scoped memory for tpu_custom_call.1']
    #allocation10 [shape = 'u8[131072]{0}', space=vmem, size = 0x20000, scoped, tag = 'input window, operand 1, single buffered']
    #allocation11 [shape = 's32[1]{0}', space=sflag, size = 0x4, scoped, tag = 'scoped memory for tpu_custom_call.1']
    #allocation12 [shape = 'u8[512]{0}', space=smem, size = 0x200, scoped, tag = 'input window, operand 5, single buffered']
    #allocation13 [shape = 'u8[1536]{0}', space=vmem, size = 0x800, scoped, tag = 'output window, operand 0, single buffered']
    #allocation14 [shape = 'u8[512]{0}', space=vmem, size = 0x400, scoped, tag = 'output window, operand 1, single buffered']
    #allocation15 [shape = 's32[1]{0}', space=sflag, size = 0x4, scoped, tag = 'scoped memory for tpu_custom_call.1']
    #allocation16 [shape = 'u8[512]{0}', space=vmem, size = 0x400, scoped, tag = 'output window, operand 2, single buffered']
    %14 = vsyncpa [#allocation7], 0
    %15 = vsyncpa [#allocation11], 0
    %16 = vsyncpa [#allocation9], 0
    %17 = vsyncpa [#allocation8], 0
    %18 = vsyncpa [#allocation15], 0
    // Predicated region
    $region2: #{tpu_custom_call.1} parent=1 // pred_check
      _
    $region3: #{tpu_custom_call.1} parent=1 // pred_check_branch
      %20 = sbr.rel (0) target = $region5
    $region4: #{tpu_custom_call.1} parent=1 // pred_region
      %s22 = ssub.s32 4864, 4864
      %23 = vsyncadd [#allocation7], %s22
      %s24 = sshll.u32 [#allocation6], 4
      %s25 = int_to_ptr.vmem [resolvable:$true] %s24
      %30 = dma.hbm_to_vmem [thread:$0]  %s0, 4864, %s25, [#allocation7], 128, 128, 8
    $region5: #{tpu_custom_call.1} parent=1 // pred_fallthru
      _
    // Predicated region
    $region6: #{tpu_custom_call.1} parent=1 // pred_check
      _
    $region7: #{tpu_custom_call.1} parent=1 // pred_check_branch
      %32 = sbr.rel (0) target = $region9
    $region8: #{tpu_custom_call.1} parent=1 // pred_region
      %s34 = ssub.s32 4096, 4096
      %35 = vsyncadd [#allocation11], %s34
      %s36 = sshll.u32 [#allocation10], 4
      %s37 = int_to_ptr.vmem [resolvable:$true] %s36
      %42 = dma.hbm_to_vmem [thread:$0]  %s1, 4096, %s37, [#allocation11], 128, 128, 8
    $region9: #{tpu_custom_call.1} parent=1 // pred_fallthru
      _
    // Predicated region
    $region10: #{tpu_custom_call.1} parent=1 // pred_check
      _
    $region11: #{tpu_custom_call.1} parent=1 // pred_check_branch
      %44 = sbr.rel (0) target = $region13
    $region12: #{tpu_custom_call.1} parent=1 // pred_region
      _
    $region13: #{tpu_custom_call.1} parent=1 // pred_fallthru
      _
    // Predicated region
    $region14: #{tpu_custom_call.1} parent=1 // pred_check
      _
    $region15: #{tpu_custom_call.1} parent=1 // pred_check_branch
      %46 = sbr.rel (0) target = $region17
    $region16: #{tpu_custom_call.1} parent=1 // pred_region
      _
    $region17: #{tpu_custom_call.1} parent=1 // pred_fallthru
      _
    // Predicated region
    $region18: #{tpu_custom_call.1} parent=1 // pred_check
      _
    $region19: #{tpu_custom_call.1} parent=1 // pred_check_branch
      %48 = sbr.rel (0) target = $region21
    $region20: #{tpu_custom_call.1} parent=1 // pred_region
      _
    $region21: #{tpu_custom_call.1} parent=1 // pred_fallthru
      _
    // Predicated region
    $region22: #{tpu_custom_call.1} parent=1 // pred_check
      _
    $region23: #{tpu_custom_call.1} parent=1 // pred_check_branch
      %50 = sbr.rel (0) target = $region25
    $region24: #{tpu_custom_call.1} parent=1 // pred_region
      %s52 = ssub.s32 16, 16
      %53 = vsyncadd [#allocation9], %s52
      %s55 = sshll.u32 %s5, 4
      %s56 = int_to_ptr.vmem [resolvable:$true] %s55
      %58 = dma.vmem_to_smem %s56, 16, [#allocation12], [#allocation9]
    $region25: #{tpu_custom_call.1} parent=1 // pred_fallthru
      _
    // Predicated region
    $region26: #{tpu_custom_call.1} parent=1 // pred_check
      _
    $region27: #{tpu_custom_call.1} parent=1 // pred_check_branch
      %60 = sbr.rel (0) target = $region29
    $region28: #{tpu_custom_call.1} parent=1 // pred_region
      %61 = dma.done [#allocation7], 4864
    $region29: #{tpu_custom_call.1} parent=1 // pred_fallthru
      _
    // Predicated region
    $region30: #{tpu_custom_call.1} parent=1 // pred_check
      _
    $region31: #{tpu_custom_call.1} parent=1 // pred_check_branch
      %63 = sbr.rel (0) target = $region33
    $region32: #{tpu_custom_call.1} parent=1 // pred_region
      %64 = dma.done [#allocation11], 4096
    $region33: #{tpu_custom_call.1} parent=1 // pred_fallthru
      _
    // Predicated region
    $region34: #{tpu_custom_call.1} parent=1 // pred_check
      _
    $region35: #{tpu_custom_call.1} parent=1 // pred_check_branch
      %66 = sbr.rel (0) target = $region37
    $region36: #{tpu_custom_call.1} parent=1 // pred_region
      %67 = dma.done [#allocation9], 16
    $region37: #{tpu_custom_call.1} parent=1 // pred_fallthru
      _
    %68 = sfence
    %p70 = scmp.eq.s32.totalorder 0, 0
    // Predicated region
    $region38: #{tpu_custom_call.1} parent=1 // pred_check
      %p71 = pneg %p70
    $region39: #{tpu_custom_call.1} parent=1 // pred_check_branch
      %73 = sbr.rel (%p71) target = $region41
    $region40: #{tpu_custom_call.1} parent=1 // pred_region
      %vm74 = vcmask 0
      %75 = vst.msk [vmem:[#allocation2] sm:$0x1] %vm74, -1e+30
      %76 = vst.msk [vmem:[#allocation3] sm:$0x1] %vm74, 0.0
      %v77 = vlaneseq
      %vm78 = vcmp.ge.s32.totalorder %v77, 0
      %vm79 = vcmp.lt.s32.totalorder %v77, 256
      %vm80 = vmand %vm78, %vm79
      %81 = vst.msk [vmem:[#allocation4] sm:$0x3] %vm80, 0.0
    $region41: #{tpu_custom_call.1} parent=1 // pred_fallthru
      _
    %v82 = vld [vmem:[#allocation6] sm:$0xff]
    %v83 = vld [vmem:[#allocation6 + $0x8] sm:$0xff]
    %v84 = vld [vmem:[#allocation6 + $0x10] sm:$0xff]
    %v85 = vld [vmem:[#allocation6 + $0x18] sm:$0xff]
    %v86 = vld [vmem:[#allocation6 + $0x20] sm:$0xff]
    %v87 = vld [vmem:[#allocation6 + $0x28] sm:$0xff]
    %v88 = vld [vmem:[#allocation6 + $0x30] sm:$0xff]
    %v89 = vld [vmem:[#allocation6 + $0x38] sm:$0xff]
    %v90 = vld [vmem:[#allocation6 + $0x40] sm:$0xff]
    %v91 = vld [vmem:[#allocation6 + $0x48] sm:$0xff]
    %v92 = vld [vmem:[#allocation6 + $0x50] sm:$0xff]
    %v93 = vld [vmem:[#allocation6 + $0x58] sm:$0xff]
    %v94 = vld [vmem:[#allocation6 + $0x60] sm:$0xff]
    %v95 = vld [vmem:[#allocation6 + $0x68] sm:$0xff]
    %v96 = vld [vmem:[#allocation6 + $0x70] sm:$0xff]
    %v97 = vld [vmem:[#allocation6 + $0x78] sm:$0xff]
    %v98 = vld [vmem:[#allocation6 + $0x80] sm:$0xff]
    %v99 = vld [vmem:[#allocation6 + $0x88] sm:$0xff]
    %v100 = vld [vmem:[#allocation6 + $0x90] sm:$0xff]
    %v101 = vld [vmem:[#allocation6 + $0x98] sm:$0xff]
    %v102 = vld [vmem:[#allocation6 + $0xa0] sm:$0xff]
    %v103 = vld [vmem:[#allocation6 + $0xa8] sm:$0xff]
    %v104 = vld [vmem:[#allocation6 + $0xb0] sm:$0xff]
    %v105 = vld [vmem:[#allocation6 + $0xb8] sm:$0xff]
    %v106 = vld [vmem:[#allocation6 + $0xc0] sm:$0xff]
    %v107 = vld [vmem:[#allocation6 + $0xc8] sm:$0xff]
    %v108 = vld [vmem:[#allocation6 + $0xd0] sm:$0xff]
    %v109 = vld [vmem:[#allocation6 + $0xd8] sm:$0xff]
    %v110 = vld [vmem:[#allocation6 + $0xe0] sm:$0xff]
    %v111 = vld [vmem:[#allocation6 + $0xe8] sm:$0xff]
    %v112 = vld [vmem:[#allocation6 + $0xf0] sm:$0xff]
    %v113 = vld [vmem:[#allocation6 + $0xf8] sm:$0xff]
    %v114 = vld [vmem:[#allocation6 + $0x100] sm:$0xff]
    %v115 = vld [vmem:[#allocation6 + $0x108] sm:$0xff]
    %v116 = vld [vmem:[#allocation6 + $0x110] sm:$0xff]
    %v117 = vld [vmem:[#allocation6 + $0x118] sm:$0xff]
    %v118 = vld [vmem:[#allocation6 + $0x120] sm:$0xff]
    %v119 = vld [vmem:[#allocation6 + $0x128] sm:$0x33]
    %v120 = vld [vmem:[#allocation10] sm:$0xff]
    %v121 = vld [vmem:[#allocation10 + $0x8] sm:$0xff]
    %v122 = vld [vmem:[#allocation10 + $0x10] sm:$0xff]
    %v123 = vld [vmem:[#allocation10 + $0x18] sm:$0xff]
    %v124 = vld [vmem:[#allocation10 + $0x20] sm:$0xff]
    %v125 = vld [vmem:[#allocation10 + $0x28] sm:$0xff]
    %v126 = vld [vmem:[#allocation10 + $0x30] sm:$0xff]
    %v127 = vld [vmem:[#allocation10 + $0x38] sm:$0xff]
    %v128 = vld [vmem:[#allocation10 + $0x40] sm:$0xff]
    %v129 = vld [vmem:[#allocation10 + $0x48] sm:$0xff]
    %v130 = vld [vmem:[#allocation10 + $0x50] sm:$0xff]
    %v131 = vld [vmem:[#allocation10 + $0x58] sm:$0xff]
    %v132 = vld [vmem:[#allocation10 + $0x60] sm:$0xff]
    %v133 = vld [vmem:[#allocation10 + $0x68] sm:$0xff]
    %v134 = vld [vmem:[#allocation10 + $0x70] sm:$0xff]
    %v135 = vld [vmem:[#allocation10 + $0x78] sm:$0xff]
    %v136 = vld [vmem:[#allocation10 + $0x80] sm:$0xff]
    %v137 = vld [vmem:[#allocation10 + $0x88] sm:$0xff]
    %v138 = vld [vmem:[#allocation10 + $0x90] sm:$0xff]
    %v139 = vld [vmem:[#allocation10 + $0x98] sm:$0xff]
    %v140 = vld [vmem:[#allocation10 + $0xa0] sm:$0xff]
    %v141 = vld [vmem:[#allocation10 + $0xa8] sm:$0xff]
    %v142 = vld [vmem:[#allocation10 + $0xb0] sm:$0xff]
    %v143 = vld [vmem:[#allocation10 + $0xb8] sm:$0xff]
    %v144 = vld [vmem:[#allocation10 + $0xc0] sm:$0xff]
    %v145 = vld [vmem:[#allocation10 + $0xc8] sm:$0xff]
    %v146 = vld [vmem:[#allocation10 + $0xd0] sm:$0xff]
    %v147 = vld [vmem:[#allocation10 + $0xd8] sm:$0xff]
    %v148 = vld [vmem:[#allocation10 + $0xe0] sm:$0xff]
    %v149 = vld [vmem:[#allocation10 + $0xe8] sm:$0xff]
    %v150 = vld [vmem:[#allocation10 + $0xf0] sm:$0xff]
    %v151 = vld [vmem:[#allocation10 + $0xf8] sm:$0xff]
    %v152 = vld [vmem:[%s2] sm:$0x3]
    %v154 = vlaneseq
    %v155 = vshrl.u32 %v154, 7
    %v156 = vsub.s32 0, %v155
    %v157 = vrot.slane %v152, %v156
    %v158 = vlaneseq
    %v159 = vshrl.u32 %v158, 7
    %v160 = vsub.s32 1, %v159
    %v161 = vrot.slane %v152, %v160
    %v202 = vunpack.c.l.b16 %v82
    %v203 = vunpack.c.h.b16 %v82
    %v204 = vunpack.c.l.b16 %v83
    %v205 = vunpack.c.h.b16 %v83
    %v206 = vunpack.c.l.b16 %v84
    %v207 = vunpack.c.h.b16 %v84
    %v208 = vunpack.c.l.b16 %v85
    %v209 = vunpack.c.h.b16 %v85
    %v210 = vunpack.c.l.b16 %v86
    %v211 = vunpack.c.h.b16 %v86
    %v212 = vunpack.c.l.b16 %v87
    %v213 = vunpack.c.h.b16 %v87
    %v214 = vunpack.c.l.b16 %v88
    %v215 = vunpack.c.h.b16 %v88
    %v216 = vunpack.c.l.b16 %v89
    %v217 = vunpack.c.h.b16 %v89
    %v218 = vunpack.c.l.b16 %v90
    %v219 = vunpack.c.h.b16 %v90
    %v220 = vunpack.c.l.b16 %v91
    %v221 = vunpack.c.h.b16 %v91
    %v222 = vunpack.c.l.b16 %v92
    %v223 = vunpack.c.h.b16 %v92
    %v224 = vunpack.c.l.b16 %v93
    %v225 = vunpack.c.h.b16 %v93
    %v226 = vunpack.c.l.b16 %v94
    %v227 = vunpack.c.h.b16 %v94
    %v228 = vunpack.c.l.b16 %v95
    %v229 = vunpack.c.h.b16 %v95
    %v230 = vunpack.c.l.b16 %v96
    %v231 = vunpack.c.h.b16 %v96
    %v232 = vunpack.c.l.b16 %v97
    %v233 = vunpack.c.h.b16 %v97
    %v234 = vunpack.c.l.b16 %v98
    %v235 = vunpack.c.h.b16 %v98
    %v236 = vunpack.c.l.b16 %v99
    %v237 = vunpack.c.h.b16 %v99
    %v238 = vunpack.c.l.b16 %v100
    %v239 = vunpack.c.h.b16 %v100
    %v240 = vunpack.c.l.b16 %v101
    %v241 = vunpack.c.h.b16 %v101
    %v242 = vunpack.c.l.b16 %v102
    %v243 = vunpack.c.h.b16 %v102
    %v244 = vunpack.c.l.b16 %v103
    %v245 = vunpack.c.h.b16 %v103
    %v246 = vunpack.c.l.b16 %v104
    %v247 = vunpack.c.h.b16 %v104
    %v248 = vunpack.c.l.b16 %v105
    %v249 = vunpack.c.h.b16 %v105
    %v250 = vunpack.c.l.b16 %v106
    %v251 = vunpack.c.h.b16 %v106
    %v252 = vunpack.c.l.b16 %v107
    %v253 = vunpack.c.h.b16 %v107
    %v254 = vunpack.c.l.b16 %v108
    %v255 = vunpack.c.h.b16 %v108
    %v256 = vunpack.c.l.b16 %v109
    %v257 = vunpack.c.h.b16 %v109
    %v258 = vunpack.c.l.b16 %v110
    %v259 = vunpack.c.h.b16 %v110
    %v260 = vunpack.c.l.b16 %v111
    %v261 = vunpack.c.h.b16 %v111
    %v262 = vunpack.c.l.b16 %v112
    %v263 = vunpack.c.h.b16 %v112
    %v264 = vunpack.c.l.b16 %v113
    %v265 = vunpack.c.h.b16 %v113
    %v266 = vunpack.c.l.b16 %v114
    %v267 = vunpack.c.h.b16 %v114
    %v268 = vunpack.c.l.b16 %v115
    %v269 = vunpack.c.h.b16 %v115
    %v270 = vunpack.c.l.b16 %v116
    %v271 = vunpack.c.h.b16 %v116
    %v272 = vunpack.c.l.b16 %v117
    %v273 = vunpack.c.h.b16 %v117
    %v274 = vunpack.c.l.b16 %v118
    %v275 = vunpack.c.h.b16 %v118
    %v276 = vunpack.c.l.b16 %v119
    %v277 = vunpack.c.h.b16 %v119
    %v278 = vpack.c.b16 %v204, %v202
    %v279 = vpack.c.b16 %v205, %v203
    %v280 = vpack.c.b16 %v208, %v206
    %v281 = vpack.c.b16 %v209, %v207
    %v282 = vpack.c.b16 %v212, %v210
    %v283 = vpack.c.b16 %v213, %v211
    %v284 = vpack.c.b16 %v216, %v214
    %v285 = vpack.c.b16 %v217, %v215
    %v286 = vpack.c.b16 %v220, %v218
    %v287 = vpack.c.b16 %v221, %v219
    %v288 = vpack.c.b16 %v224, %v222
    %v289 = vpack.c.b16 %v225, %v223
    %v290 = vpack.c.b16 %v228, %v226
    %v291 = vpack.c.b16 %v229, %v227
    %v292 = vpack.c.b16 %v232, %v230
    %v293 = vpack.c.b16 %v233, %v231
    %v294 = vpack.c.b16 %v236, %v234
    %v295 = vpack.c.b16 %v237, %v235
    %v296 = vpack.c.b16 %v240, %v238
    %v297 = vpack.c.b16 %v241, %v239
    %v298 = vpack.c.b16 %v244, %v242
    %v299 = vpack.c.b16 %v245, %v243
    %v300 = vpack.c.b16 %v248, %v246
    %v301 = vpack.c.b16 %v249, %v247
    %v302 = vpack.c.b16 %v252, %v250
    %v303 = vpack.c.b16 %v253, %v251
    %v304 = vpack.c.b16 %v256, %v254
    %v305 = vpack.c.b16 %v257, %v255
    %v306 = vpack.c.b16 %v260, %v258
    %v307 = vpack.c.b16 %v261, %v259
    %v308 = vpack.c.b16 %v264, %v262
    %v309 = vpack.c.b16 %v265, %v263
    %v310 = vpack.c.b16 %v268, %v266
    %v311 = vpack.c.b16 %v269, %v267
    %v312 = vpack.c.b16 %v272, %v270
    %v313 = vpack.c.b16 %v273, %v271
    %v314 = vpack.c.b16 %v276, %v274
    %v315 = vpack.c.b16 %v277, %v275
    %v386 = vunpack.c.l.b16 %v120
    %v387 = vunpack.c.h.b16 %v120
    %v388 = vunpack.c.l.b16 %v121
    %v389 = vunpack.c.h.b16 %v121
    %v390 = vunpack.c.l.b16 %v122
    %v391 = vunpack.c.h.b16 %v122
    %v392 = vunpack.c.l.b16 %v123
    %v393 = vunpack.c.h.b16 %v123
    %v394 = vunpack.c.l.b16 %v124
    %v395 = vunpack.c.h.b16 %v124
    %v396 = vunpack.c.l.b16 %v125
    %v397 = vunpack.c.h.b16 %v125
    %v398 = vunpack.c.l.b16 %v126
    %v399 = vunpack.c.h.b16 %v126
    %v400 = vunpack.c.l.b16 %v127
    %v401 = vunpack.c.h.b16 %v127
    %v402 = vunpack.c.l.b16 %v128
    %v403 = vunpack.c.h.b16 %v128
    %v404 = vunpack.c.l.b16 %v129
    %v405 = vunpack.c.h.b16 %v129
    %v406 = vunpack.c.l.b16 %v130
    %v407 = vunpack.c.h.b16 %v130
    %v408 = vunpack.c.l.b16 %v131
    %v409 = vunpack.c.h.b16 %v131
    %v410 = vunpack.c.l.b16 %v132
    %v411 = vunpack.c.h.b16 %v132
    %v412 = vunpack.c.l.b16 %v133
    %v413 = vunpack.c.h.b16 %v133
    %v414 = vunpack.c.l.b16 %v134
    %v415 = vunpack.c.h.b16 %v134
    %v416 = vunpack.c.l.b16 %v135
    %v417 = vunpack.c.h.b16 %v135
    %v418 = vunpack.c.l.b16 %v136
    %v419 = vunpack.c.h.b16 %v136
    %v420 = vunpack.c.l.b16 %v137
    %v421 = vunpack.c.h.b16 %v137
    %v422 = vunpack.c.l.b16 %v138
    %v423 = vunpack.c.h.b16 %v138
    %v424 = vunpack.c.l.b16 %v139
    %v425 = vunpack.c.h.b16 %v139
    %v426 = vunpack.c.l.b16 %v140
    %v427 = vunpack.c.h.b16 %v140
    %v428 = vunpack.c.l.b16 %v141
    %v429 = vunpack.c.h.b16 %v141
    %v430 = vunpack.c.l.b16 %v142
    %v431 = vunpack.c.h.b16 %v142
    %v432 = vunpack.c.l.b16 %v143
    %v433 = vunpack.c.h.b16 %v143
    %v434 = vunpack.c.l.b16 %v144
    %v435 = vunpack.c.h.b16 %v144
    %v436 = vunpack.c.l.b16 %v145
    %v437 = vunpack.c.h.b16 %v145
    %v438 = vunpack.c.l.b16 %v146
    %v439 = vunpack.c.h.b16 %v146
    %v440 = vunpack.c.l.b16 %v147
    %v441 = vunpack.c.h.b16 %v147
    %v442 = vunpack.c.l.b16 %v148
    %v443 = vunpack.c.h.b16 %v148
    %v444 = vunpack.c.l.b16 %v149
    %v445 = vunpack.c.h.b16 %v149
    %v446 = vunpack.c.l.b16 %v150
    %v447 = vunpack.c.h.b16 %v150
    %v448 = vunpack.c.l.b16 %v151
    %v449 = vunpack.c.h.b16 %v151
    %v450 = vpack.c.b16 %v388, %v386
    %v451 = vpack.c.b16 %v389, %v387
    %v452 = vpack.c.b16 %v392, %v390
    %v453 = vpack.c.b16 %v393, %v391
    %v454 = vpack.c.b16 %v396, %v394
    %v455 = vpack.c.b16 %v397, %v395
    %v456 = vpack.c.b16 %v400, %v398
    %v457 = vpack.c.b16 %v401, %v399
    %v458 = vpack.c.b16 %v404, %v402
    %v459 = vpack.c.b16 %v405, %v403
    %v460 = vpack.c.b16 %v408, %v406
    %v461 = vpack.c.b16 %v409, %v407
    %v462 = vpack.c.b16 %v412, %v410
    %v463 = vpack.c.b16 %v413, %v411
    %v464 = vpack.c.b16 %v416, %v414
    %v465 = vpack.c.b16 %v417, %v415
    %v466 = vpack.c.b16 %v420, %v418
    %v467 = vpack.c.b16 %v421, %v419
    %v468 = vpack.c.b16 %v424, %v422
    %v469 = vpack.c.b16 %v425, %v423
    %v470 = vpack.c.b16 %v428, %v426
    %v471 = vpack.c.b16 %v429, %v427
    %v472 = vpack.c.b16 %v432, %v430
    %v473 = vpack.c.b16 %v433, %v431
    %v474 = vpack.c.b16 %v436, %v434
    %v475 = vpack.c.b16 %v437, %v435
    %v476 = vpack.c.b16 %v440, %v438
    %v477 = vpack.c.b16 %v441, %v439
    %v478 = vpack.c.b16 %v444, %v442
    %v479 = vpack.c.b16 %v445, %v443
    %v480 = vpack.c.b16 %v448, %v446
    %v481 = vpack.c.b16 %v449, %v447
    %514 = vmatprep.subr.bf16.mxu0 %v465
    %515 = vmatpush1.bf16.msra.mxu0 %v464
    %516 = vmatprep.subr.bf16.mxu0 %v463
    %517 = vmatpush1.bf16.msra.mxu0 %v462
    %518 = vmatprep.subr.bf16.mxu0 %v461
    %519 = vmatpush1.bf16.msra.mxu0 %v460
    %520 = vmatprep.subr.bf16.mxu0 %v459
    %521 = vmatpush1.bf16.msra.mxu0 %v458
    %522 = vmatprep.subr.bf16.mxu0 %v457
    %523 = vmatpush1.bf16.msra.mxu0 %v456
    %524 = vmatprep.subr.bf16.mxu0 %v455
    %525 = vmatpush1.bf16.msra.mxu0 %v454
    %526 = vmatprep.subr.bf16.mxu0 %v453
    %527 = vmatpush1.bf16.msra.mxu0 %v452
    %528 = vmatprep.subr.bf16.mxu0 %v451
    %529 = vmatpush1.bf16.msra.mxu0 %v450
    %530 = vmatprep.subr.bf16.mxu0 %v481
    %531 = vmatpush2.bf16.msra.mxu0 %v480
    %532 = vmatprep.subr.bf16.mxu0 %v479
    %533 = vmatpush2.bf16.msra.mxu0 %v478
    %534 = vmatprep.subr.bf16.mxu0 %v477
    %535 = vmatpush2.bf16.msra.mxu0 %v476
    %536 = vmatprep.subr.bf16.mxu0 %v475
    %537 = vmatpush2.bf16.msra.mxu0 %v474
    %538 = vmatprep.subr.bf16.mxu0 %v473
    %539 = vmatpush2.bf16.msra.mxu0 %v472
    %540 = vmatprep.subr.bf16.mxu0 %v471
    %541 = vmatpush2.bf16.msra.mxu0 %v470
    %542 = vmatprep.subr.bf16.mxu0 %v469
    %543 = vmatpush2.bf16.msra.mxu0 %v468
    %544 = vmatprep.subr.bf16.mxu0 %v467
    %545 = vmatpush2.bf16.msra.mxu0 %v466
    %546 = vmatprep.mubr.bf16.mxu0 %v279
    %547 = vmatmul.mubr.bf16.gmra.mxu0 %v278
    %v548 = vpop.f32.mrf.mxu0
    %v549 = vadd.f32 %v157, %v548
    %v550 = vpop.f32.mrf.mxu0
    %v551 = vadd.f32 %v161, %v550
    %v552 = vpop.f32.mrf.mxu0
    %v553 = vadd.f32 %v157, %v552
    %v554 = vpop.f32.mrf.mxu0
    %v555 = vadd.f32 %v161, %v554
    %556 = vmatprep.mubr.bf16.mxu0 %v281
    %557 = vmatmul.mubr.bf16.gmra.mxu0 %v280
    %v558 = vpop.f32.mrf.mxu0
    %v559 = vadd.f32 %v157, %v558
    %v560 = vpop.f32.mrf.mxu0
    %v561 = vadd.f32 %v161, %v560
    %v562 = vpop.f32.mrf.mxu0
    %v563 = vadd.f32 %v157, %v562
    %v564 = vpop.f32.mrf.mxu0
    %v565 = vadd.f32 %v161, %v564
    %566 = vmatprep.mubr.bf16.mxu0 %v283
    %567 = vmatmul.mubr.bf16.gmra.mxu0 %v282
    %v568 = vpop.f32.mrf.mxu0
    %v569 = vadd.f32 %v157, %v568
    %v570 = vpop.f32.mrf.mxu0
    %v571 = vadd.f32 %v161, %v570
    %v572 = vpop.f32.mrf.mxu0
    %v573 = vadd.f32 %v157, %v572
    %v574 = vpop.f32.mrf.mxu0
    %v575 = vadd.f32 %v161, %v574
    %576 = vmatprep.mubr.bf16.mxu0 %v285
    %577 = vmatmul.mubr.bf16.gmra.mxu0 %v284
    %v578 = vpop.f32.mrf.mxu0
    %v579 = vadd.f32 %v157, %v578
    %v580 = vpop.f32.mrf.mxu0
    %v581 = vadd.f32 %v161, %v580
    %v582 = vpop.f32.mrf.mxu0
    %v583 = vadd.f32 %v157, %v582
    %v584 = vpop.f32.mrf.mxu0
    %v585 = vadd.f32 %v161, %v584
    %586 = vmatprep.mubr.bf16.mxu0 %v287
    %587 = vmatmul.mubr.bf16.gmra.mxu0 %v286
    %v588 = vpop.f32.mrf.mxu0
    %v589 = vadd.f32 %v157, %v588
    %v590 = vpop.f32.mrf.mxu0
    %v591 = vadd.f32 %v161, %v590
    %v592 = vpop.f32.mrf.mxu0
    %v593 = vadd.f32 %v157, %v592
    %v594 = vpop.f32.mrf.mxu0
    %v595 = vadd.f32 %v161, %v594
    %596 = vmatprep.mubr.bf16.mxu0 %v289
    %597 = vmatmul.mubr.bf16.gmra.mxu0 %v288
    %v598 = vpop.f32.mrf.mxu0
    %v599 = vadd.f32 %v157, %v598
    %v600 = vpop.f32.mrf.mxu0
    %v601 = vadd.f32 %v161, %v600
    %v602 = vpop.f32.mrf.mxu0
    %v603 = vadd.f32 %v157, %v602
    %v604 = vpop.f32.mrf.mxu0
    %v605 = vadd.f32 %v161, %v604
    %606 = vmatprep.mubr.bf16.mxu0 %v291
    %607 = vmatmul.mubr.bf16.gmra.mxu0 %v290
    %v608 = vpop.f32.mrf.mxu0
    %v609 = vadd.f32 %v157, %v608
    %v610 = vpop.f32.mrf.mxu0
    %v611 = vadd.f32 %v161, %v610
    %v612 = vpop.f32.mrf.mxu0
    %v613 = vadd.f32 %v157, %v612
    %v614 = vpop.f32.mrf.mxu0
    %v615 = vadd.f32 %v161, %v614
    %616 = vmatprep.mubr.bf16.mxu0 %v293
    %617 = vmatmul.mubr.bf16.gmra.mxu0 %v292
    %v618 = vpop.f32.mrf.mxu0
    %v619 = vadd.f32 %v157, %v618
    %v620 = vpop.f32.mrf.mxu0
    %v621 = vadd.f32 %v161, %v620
    %v622 = vpop.f32.mrf.mxu0
    %v623 = vadd.f32 %v157, %v622
    %v624 = vpop.f32.mrf.mxu0
    %v625 = vadd.f32 %v161, %v624
    %626 = vmatprep.mubr.bf16.mxu0 %v295
    %627 = vmatmul.mubr.bf16.gmra.mxu0 %v294
    %v628 = vpop.f32.mrf.mxu0
    %v629 = vadd.f32 %v157, %v628
    %v630 = vpop.f32.mrf.mxu0
    %v631 = vadd.f32 %v161, %v630
    %v632 = vpop.f32.mrf.mxu0
    %v633 = vadd.f32 %v157, %v632
    %v634 = vpop.f32.mrf.mxu0
    %v635 = vadd.f32 %v161, %v634
    %636 = vmatprep.mubr.bf16.mxu0 %v297
    %637 = vmatmul.mubr.bf16.gmra.mxu0 %v296
    %v638 = vpop.f32.mrf.mxu0
    %v639 = vadd.f32 %v157, %v638
    %v640 = vpop.f32.mrf.mxu0
    %v641 = vadd.f32 %v161, %v640
    %v642 = vpop.f32.mrf.mxu0
    %v643 = vadd.f32 %v157, %v642
    %v644 = vpop.f32.mrf.mxu0
    %v645 = vadd.f32 %v161, %v644
    %646 = vmatprep.mubr.bf16.mxu0 %v299
    %647 = vmatmul.mubr.bf16.gmra.mxu0 %v298
    %v648 = vpop.f32.mrf.mxu0
    %v649 = vadd.f32 %v157, %v648
    %v650 = vpop.f32.mrf.mxu0
    %v651 = vadd.f32 %v161, %v650
    %v652 = vpop.f32.mrf.mxu0
    %v653 = vadd.f32 %v157, %v652
    %v654 = vpop.f32.mrf.mxu0
    %v655 = vadd.f32 %v161, %v654
    %656 = vmatprep.mubr.bf16.mxu0 %v301
    %657 = vmatmul.mubr.bf16.gmra.mxu0 %v300
    %v658 = vpop.f32.mrf.mxu0
    %v659 = vadd.f32 %v157, %v658
    %v660 = vpop.f32.mrf.mxu0
    %v661 = vadd.f32 %v161, %v660
    %v662 = vpop.f32.mrf.mxu0
    %v663 = vadd.f32 %v157, %v662
    %v664 = vpop.f32.mrf.mxu0
    %v665 = vadd.f32 %v161, %v664
    %666 = vmatprep.mubr.bf16.mxu0 %v303
    %667 = vmatmul.mubr.bf16.gmra.mxu0 %v302
    %v668 = vpop.f32.mrf.mxu0
    %v669 = vadd.f32 %v157, %v668
    %v670 = vpop.f32.mrf.mxu0
    %v671 = vadd.f32 %v161, %v670
    %v672 = vpop.f32.mrf.mxu0
    %v673 = vadd.f32 %v157, %v672
    %v674 = vpop.f32.mrf.mxu0
    %v675 = vadd.f32 %v161, %v674
    %676 = vmatprep.mubr.bf16.mxu0 %v305
    %677 = vmatmul.mubr.bf16.gmra.mxu0 %v304
    %v678 = vpop.f32.mrf.mxu0
    %v679 = vadd.f32 %v157, %v678
    %v680 = vpop.f32.mrf.mxu0
    %v681 = vadd.f32 %v161, %v680
    %v682 = vpop.f32.mrf.mxu0
    %v683 = vadd.f32 %v157, %v682
    %v684 = vpop.f32.mrf.mxu0
    %v685 = vadd.f32 %v161, %v684
    %686 = vmatprep.mubr.bf16.mxu0 %v307
    %687 = vmatmul.mubr.bf16.gmra.mxu0 %v306
    %v688 = vpop.f32.mrf.mxu0
    %v689 = vadd.f32 %v157, %v688
    %v690 = vpop.f32.mrf.mxu0
    %v691 = vadd.f32 %v161, %v690
    %v692 = vpop.f32.mrf.mxu0
    %v693 = vadd.f32 %v157, %v692
    %v694 = vpop.f32.mrf.mxu0
    %v695 = vadd.f32 %v161, %v694
    %696 = vmatprep.mubr.bf16.mxu0 %v309
    %697 = vmatmul.mubr.bf16.gmra.mxu0 %v308
    %v698 = vpop.f32.mrf.mxu0
    %v699 = vadd.f32 %v157, %v698
    %v700 = vpop.f32.mrf.mxu0
    %v701 = vadd.f32 %v161, %v700
    %v702 = vpop.f32.mrf.mxu0
    %v703 = vadd.f32 %v157, %v702
    %v704 = vpop.f32.mrf.mxu0
    %v705 = vadd.f32 %v161, %v704
    %706 = vmatprep.mubr.bf16.mxu0 %v311
    %707 = vmatmul.mubr.bf16.gmra.mxu0 %v310
    %v708 = vpop.f32.mrf.mxu0
    %v709 = vadd.f32 %v157, %v708
    %v710 = vpop.f32.mrf.mxu0
    %v711 = vadd.f32 %v161, %v710
    %v712 = vpop.f32.mrf.mxu0
    %v713 = vadd.f32 %v157, %v712
    %v714 = vpop.f32.mrf.mxu0
    %v715 = vadd.f32 %v161, %v714
    %716 = vmatprep.mubr.bf16.mxu0 %v313
    %717 = vmatmul.mubr.bf16.gmra.mxu0 %v312
    %v718 = vpop.f32.mrf.mxu0
    %v719 = vadd.f32 %v157, %v718
    %v720 = vpop.f32.mrf.mxu0
    %v721 = vadd.f32 %v161, %v720
    %v722 = vpop.f32.mrf.mxu0
    %v723 = vadd.f32 %v157, %v722
    %v724 = vpop.f32.mrf.mxu0
    %v725 = vadd.f32 %v161, %v724
    %726 = vmatprep.mubr.bf16.mxu0 %v315
    %727 = vmatmul.mubr.bf16.gmra.mxu0 %v314
    %v728 = vpop.f32.mrf.mxu0
    %v729 = vadd.f32 %v157, %v728
    %v730 = vpop.f32.mrf.mxu0
    %v731 = vadd.f32 %v161, %v730
    %v732 = vpop.f32.mrf.mxu0
    %v733 = vadd.f32 %v157, %v732
    %v734 = vpop.f32.mrf.mxu0
    %v735 = vadd.f32 %v161, %v734
    %736 = vdwg.mxu0
    %v737 = vtanh.pop %v549
    %v738 = vtanh.pop %v553
    %v739 = vtanh.pop %v559
    %v740 = vtanh.pop %v563
    %v741 = vtanh.pop %v569
    %v742 = vtanh.pop %v573
    %v743 = vtanh.pop %v579
    %v744 = vtanh.pop %v583
    %v745 = vtanh.pop %v589
    %v746 = vtanh.pop %v593
    %v747 = vtanh.pop %v599
    %v748 = vtanh.pop %v603
    %v749 = vtanh.pop %v609
    %v750 = vtanh.pop %v613
    %v751 = vtanh.pop %v619
    %v752 = vtanh.pop %v623
    %v753 = vtanh.pop %v629
    %v754 = vtanh.pop %v633
    %v755 = vtanh.pop %v639
    %v756 = vtanh.pop %v643
    %v757 = vtanh.pop %v649
    %v758 = vtanh.pop %v653
    %v759 = vtanh.pop %v659
    %v760 = vtanh.pop %v663
    %v761 = vtanh.pop %v669
    %v762 = vtanh.pop %v673
    %v763 = vtanh.pop %v679
    %v764 = vtanh.pop %v683
    %v765 = vtanh.pop %v689
    %v766 = vtanh.pop %v693
    %v767 = vtanh.pop %v699
    %v768 = vtanh.pop %v703
    %v769 = vtanh.pop %v709
    %v770 = vtanh.pop %v713
    %v771 = vtanh.pop %v719
    %v772 = vtanh.pop %v723
    %v773 = vtanh.pop %v729
    %v774 = vtanh.pop %v733
    %v775 = vxor.u32 %v551, 2147483648
    %v776 = vxor.u32 %v555, 2147483648
    %v777 = vxor.u32 %v561, 2147483648
    %v778 = vxor.u32 %v565, 2147483648
    %v779 = vxor.u32 %v571, 2147483648
    %v780 = vxor.u32 %v575, 2147483648
    %v781 = vxor.u32 %v581, 2147483648
    %v782 = vxor.u32 %v585, 2147483648
    %v783 = vxor.u32 %v591, 2147483648
    %v784 = vxor.u32 %v595, 2147483648
    %v785 = vxor.u32 %v601, 2147483648
    %v786 = vxor.u32 %v605, 2147483648
    %v787 = vxor.u32 %v611, 2147483648
    %v788 = vxor.u32 %v615, 2147483648
    %v789 = vxor.u32 %v621, 2147483648
    %v790 = vxor.u32 %v625, 2147483648
    %v791 = vxor.u32 %v631, 2147483648
    %v792 = vxor.u32 %v635, 2147483648
    %v793 = vxor.u32 %v641, 2147483648
    %v794 = vxor.u32 %v645, 2147483648
    %v795 = vxor.u32 %v651, 2147483648
    %v796 = vxor.u32 %v655, 2147483648
    %v797 = vxor.u32 %v661, 2147483648
    %v798 = vxor.u32 %v665, 2147483648
    %v799 = vxor.u32 %v671, 2147483648
    %v800 = vxor.u32 %v675, 2147483648
    %v801 = vxor.u32 %v681, 2147483648
    %v802 = vxor.u32 %v685, 2147483648
    %v803 = vxor.u32 %v691, 2147483648
    %v804 = vxor.u32 %v695, 2147483648
    %v805 = vxor.u32 %v701, 2147483648
    %v806 = vxor.u32 %v705, 2147483648
    %v807 = vxor.u32 %v711, 2147483648
    %v808 = vxor.u32 %v715, 2147483648
    %v809 = vxor.u32 %v721, 2147483648
    %v810 = vxor.u32 %v725, 2147483648
    %v811 = vxor.u32 %v731, 2147483648
    %v812 = vxor.u32 %v735, 2147483648
    %v813 = vmul.f32 %v775, 1.442695
    %v814 = vpow.pop %v813
    %v815 = vmul.f32 %v776, 1.442695
    %v816 = vpow.pop %v815
    %v817 = vmul.f32 %v777, 1.442695
    %v818 = vpow.pop %v817
    %v819 = vmul.f32 %v778, 1.442695
    %v820 = vpow.pop %v819
    %v821 = vmul.f32 %v779, 1.442695
    %v822 = vpow.pop %v821
    %v823 = vmul.f32 %v780, 1.442695
    %v824 = vpow.pop %v823
    %v825 = vmul.f32 %v781, 1.442695
    %v826 = vpow.pop %v825
    %v827 = vmul.f32 %v782, 1.442695
    %v828 = vpow.pop %v827
    %v829 = vmul.f32 %v783, 1.442695
    %v830 = vpow.pop %v829
    %v831 = vmul.f32 %v784, 1.442695
    %v832 = vpow.pop %v831
    %v833 = vmul.f32 %v785, 1.442695
    %v834 = vpow.pop %v833
    %v835 = vmul.f32 %v786, 1.442695
    %v836 = vpow.pop %v835
    %v837 = vmul.f32 %v787, 1.442695
    %v838 = vpow.pop %v837
    %v839 = vmul.f32 %v788, 1.442695
    %v840 = vpow.pop %v839
    %v841 = vmul.f32 %v789, 1.442695
    %v842 = vpow.pop %v841
    %v843 = vmul.f32 %v790, 1.442695
    %v844 = vpow.pop %v843
    %v845 = vmul.f32 %v791, 1.442695
    %v846 = vpow.pop %v845
    %v847 = vmul.f32 %v792, 1.442695
    %v848 = vpow.pop %v847
    %v849 = vmul.f32 %v793, 1.442695
    %v850 = vpow.pop %v849
    %v851 = vmul.f32 %v794, 1.442695
    %v852 = vpow.pop %v851
    %v853 = vmul.f32 %v795, 1.442695
    %v854 = vpow.pop %v853
    %v855 = vmul.f32 %v796, 1.442695
    %v856 = vpow.pop %v855
    %v857 = vmul.f32 %v797, 1.442695
    %v858 = vpow.pop %v857
    %v859 = vmul.f32 %v798, 1.442695
    %v860 = vpow.pop %v859
    %v861 = vmul.f32 %v799, 1.442695
    %v862 = vpow.pop %v861
    %v863 = vmul.f32 %v800, 1.442695
    %v864 = vpow.pop %v863
    %v865 = vmul.f32 %v801, 1.442695
    %v866 = vpow.pop %v865
    %v867 = vmul.f32 %v802, 1.442695
    %v868 = vpow.pop %v867
    %v869 = vmul.f32 %v803, 1.442695
    %v870 = vpow.pop %v869
    %v871 = vmul.f32 %v804, 1.442695
    %v872 = vpow.pop %v871
    %v873 = vmul.f32 %v805, 1.442695
    %v874 = vpow.pop %v873
    %v875 = vmul.f32 %v806, 1.442695
    %v876 = vpow.pop %v875
    %v877 = vmul.f32 %v807, 1.442695
    %v878 = vpow.pop %v877
    %v879 = vmul.f32 %v808, 1.442695
    %v880 = vpow.pop %v879
    %v881 = vmul.f32 %v809, 1.442695
    %v882 = vpow.pop %v881
    %v883 = vmul.f32 %v810, 1.442695
    %v884 = vpow.pop %v883
    %v885 = vmul.f32 %v811, 1.442695
    %v886 = vpow.pop %v885
    %v887 = vmul.f32 %v812, 1.442695
    %v888 = vpow.pop %v887
    %v889 = vadd.f32 %v814, 1.0
    %v890 = vadd.f32 %v816, 1.0
    %v891 = vadd.f32 %v818, 1.0
    %v892 = vadd.f32 %v820, 1.0
    %v893 = vadd.f32 %v822, 1.0
    %v894 = vadd.f32 %v824, 1.0
    %v895 = vadd.f32 %v826, 1.0
    %v896 = vadd.f32 %v828, 1.0
    %v897 = vadd.f32 %v830, 1.0
    %v898 = vadd.f32 %v832, 1.0
    %v899 = vadd.f32 %v834, 1.0
    %v900 = vadd.f32 %v836, 1.0
    %v901 = vadd.f32 %v838, 1.0
    %v902 = vadd.f32 %v840, 1.0
    %v903 = vadd.f32 %v842, 1.0
    %v904 = vadd.f32 %v844, 1.0
    %v905 = vadd.f32 %v846, 1.0
    %v906 = vadd.f32 %v848, 1.0
    %v907 = vadd.f32 %v850, 1.0
    %v908 = vadd.f32 %v852, 1.0
    %v909 = vadd.f32 %v854, 1.0
    %v910 = vadd.f32 %v856, 1.0
    %v911 = vadd.f32 %v858, 1.0
    %v912 = vadd.f32 %v860, 1.0
    %v913 = vadd.f32 %v862, 1.0
    %v914 = vadd.f32 %v864, 1.0
    %v915 = vadd.f32 %v866, 1.0
    %v916 = vadd.f32 %v868, 1.0
    %v917 = vadd.f32 %v870, 1.0
    %v918 = vadd.f32 %v872, 1.0
    %v919 = vadd.f32 %v874, 1.0
    %v920 = vadd.f32 %v876, 1.0
    %v921 = vadd.f32 %v878, 1.0
    %v922 = vadd.f32 %v880, 1.0
    %v923 = vadd.f32 %v882, 1.0
    %v924 = vadd.f32 %v884, 1.0
    %v925 = vadd.f32 %v886, 1.0
    %v926 = vadd.f32 %v888, 1.0
    %v927 = vrcp.pop %v889
    %v928 = vmul.f32 1.0, %v927
    %v929 = vrcp.pop %v890
    %v930 = vmul.f32 1.0, %v929
    %v931 = vrcp.pop %v891
    %v932 = vmul.f32 1.0, %v931
    %v933 = vrcp.pop %v892
    %v934 = vmul.f32 1.0, %v933
    %v935 = vrcp.pop %v893
    %v936 = vmul.f32 1.0, %v935
    %v937 = vrcp.pop %v894
    %v938 = vmul.f32 1.0, %v937
    %v939 = vrcp.pop %v895
    %v940 = vmul.f32 1.0, %v939
    %v941 = vrcp.pop %v896
    %v942 = vmul.f32 1.0, %v941
    %v943 = vrcp.pop %v897
    %v944 = vmul.f32 1.0, %v943
    %v945 = vrcp.pop %v898
    %v946 = vmul.f32 1.0, %v945
    %v947 = vrcp.pop %v899
    %v948 = vmul.f32 1.0, %v947
    %v949 = vrcp.pop %v900
    %v950 = vmul.f32 1.0, %v949
    %v951 = vrcp.pop %v901
    %v952 = vmul.f32 1.0, %v951
    %v953 = vrcp.pop %v902
    %v954 = vmul.f32 1.0, %v953
    %v955 = vrcp.pop %v903
    %v956 = vmul.f32 1.0, %v955
    %v957 = vrcp.pop %v904
    %v958 = vmul.f32 1.0, %v957
    %v959 = vrcp.pop %v905
    %v960 = vmul.f32 1.0, %v959
    %v961 = vrcp.pop %v906
    %v962 = vmul.f32 1.0, %v961
    %v963 = vrcp.pop %v907
    %v964 = vmul.f32 1.0, %v963
    %v965 = vrcp.pop %v908
    %v966 = vmul.f32 1.0, %v965
    %v967 = vrcp.pop %v909
    %v968 = vmul.f32 1.0, %v967
    %v969 = vrcp.pop %v910
    %v970 = vmul.f32 1.0, %v969
    %v971 = vrcp.pop %v911
    %v972 = vmul.f32 1.0, %v971
    %v973 = vrcp.pop %v912
    %v974 = vmul.f32 1.0, %v973
    %v975 = vrcp.pop %v913
    %v976 = vmul.f32 1.0, %v975
    %v977 = vrcp.pop %v914
    %v978 = vmul.f32 1.0, %v977
    %v979 = vrcp.pop %v915
    %v980 = vmul.f32 1.0, %v979
    %v981 = vrcp.pop %v916
    %v982 = vmul.f32 1.0, %v981
    %v983 = vrcp.pop %v917
    %v984 = vmul.f32 1.0, %v983
    %v985 = vrcp.pop %v918
    %v986 = vmul.f32 1.0, %v985
    %v987 = vrcp.pop %v919
    %v988 = vmul.f32 1.0, %v987
    %v989 = vrcp.pop %v920
    %v990 = vmul.f32 1.0, %v989
    %v991 = vrcp.pop %v921
    %v992 = vmul.f32 1.0, %v991
    %v993 = vrcp.pop %v922
    %v994 = vmul.f32 1.0, %v993
    %v995 = vrcp.pop %v923
    %v996 = vmul.f32 1.0, %v995
    %v997 = vrcp.pop %v924
    %v998 = vmul.f32 1.0, %v997
    %v999 = vrcp.pop %v925
    %v1000 = vmul.f32 1.0, %v999
    %v1001 = vrcp.pop %v926
    %v1002 = vmul.f32 1.0, %v1001
    %v1003 = vmul.f32 %v737, %v928
    %v1004 = vmul.f32 %v738, %v930
    %v1005 = vmul.f32 %v739, %v932
    %v1006 = vmul.f32 %v740, %v934
    %v1007 = vmul.f32 %v741, %v936
    %v1008 = vmul.f32 %v742, %v938
    %v1009 = vmul.f32 %v743, %v940
    %v1010 = vmul.f32 %v744, %v942
    %v1011 = vmul.f32 %v745, %v944
    %v1012 = vmul.f32 %v746, %v946
    %v1013 = vmul.f32 %v747, %v948
    %v1014 = vmul.f32 %v748, %v950
    %v1015 = vmul.f32 %v749, %v952
    %v1016 = vmul.f32 %v750, %v954
    %v1017 = vmul.f32 %v751, %v956
    %v1018 = vmul.f32 %v752, %v958
    %v1019 = vmul.f32 %v753, %v960
    %v1020 = vmul.f32 %v754, %v962
    %v1021 = vmul.f32 %v755, %v964
    %v1022 = vmul.f32 %v756, %v966
    %v1023 = vmul.f32 %v757, %v968
    %v1024 = vmul.f32 %v758, %v970
    %v1025 = vmul.f32 %v759, %v972
    %v1026 = vmul.f32 %v760, %v974
    %v1027 = vmul.f32 %v761, %v976
    %v1028 = vmul.f32 %v762, %v978
    %v1029 = vmul.f32 %v763, %v980
    %v1030 = vmul.f32 %v764, %v982
    %v1031 = vmul.f32 %v765, %v984
    %v1032 = vmul.f32 %v766, %v986
    %v1033 = vmul.f32 %v767, %v988
    %v1034 = vmul.f32 %v768, %v990
    %v1035 = vmul.f32 %v769, %v992
    %v1036 = vmul.f32 %v770, %v994
    %v1037 = vmul.f32 %v771, %v996
    %v1038 = vmul.f32 %v772, %v998
    %v1039 = vmul.f32 %v773, %v1000
    %v1040 = vmul.f32 %v774, %v1002
    %s1041 = sld [smem:[#allocation12]]
    %v1042 = vld [vmem:[%s3] sm:$0x1]
    %v1043 = vstv %s1041
    %1044 = vmatprep.subr.mxu0 0.0
    %1045 = vmatpush1.xpose.msra.mxu0 %v1018
    %1046 = vmatprep.subr.mxu0 0.0
    %1047 = vmatpush1.xpose.msra.mxu0 %v1017
    %1048 = vmatprep.subr.mxu0 0.0
    %1049 = vmatpush1.xpose.msra.mxu0 %v1016
    %1050 = vmatprep.subr.mxu0 0.0
    %1051 = vmatpush1.xpose.msra.mxu0 %v1015
    %1052 = vmatprep.subr.mxu0 0.0
    %1053 = vmatpush1.xpose.msra.mxu0 %v1014
    %1054 = vmatprep.subr.mxu0 0.0
    %1055 = vmatpush1.xpose.msra.mxu0 %v1013
    %1056 = vmatprep.subr.mxu0 0.0
    %1057 = vmatpush1.xpose.msra.mxu0 %v1012
    %1058 = vmatprep.subr.mxu0 0.0
    %1059 = vmatpush1.xpose.msra.mxu0 %v1011
    %1060 = vmatprep.subr.mxu0 0.0
    %1061 = vmatpush1.xpose.msra.mxu0 %v1010
    %1062 = vmatprep.subr.mxu0 0.0
    %1063 = vmatpush1.xpose.msra.mxu0 %v1009
    %1064 = vmatprep.subr.mxu0 0.0
    %1065 = vmatpush1.xpose.msra.mxu0 %v1008
    %1066 = vmatprep.subr.mxu0 0.0
    %1067 = vmatpush1.xpose.msra.mxu0 %v1007
    %1068 = vmatprep.subr.mxu0 0.0
    %1069 = vmatpush1.xpose.msra.mxu0 %v1006
    %1070 = vmatprep.subr.mxu0 0.0
    %1071 = vmatpush1.xpose.msra.mxu0 %v1005
    %1072 = vmatprep.subr.mxu0 0.0
    %1073 = vmatpush1.xpose.msra.mxu0 %v1004
    %1074 = vmatprep.subr.mxu0 0.0
    %1075 = vmatpush1.xpose.msra.mxu0 %v1003
    %1076 = vmatprep.subr.mxu0 0.0
    %1077 = vmatpush2.xpose.msra.mxu0 %v1034
    %1078 = vmatprep.subr.mxu0 0.0
    %1079 = vmatpush2.xpose.msra.mxu0 %v1033
    %1080 = vmatprep.subr.mxu0 0.0
    %1081 = vmatpush2.xpose.msra.mxu0 %v1032
    %1082 = vmatprep.subr.mxu0 0.0
    %1083 = vmatpush2.xpose.msra.mxu0 %v1031
    %1084 = vmatprep.subr.mxu0 0.0
    %1085 = vmatpush2.xpose.msra.mxu0 %v1030
    %1086 = vmatprep.subr.mxu0 0.0
    %1087 = vmatpush2.xpose.msra.mxu0 %v1029
    %1088 = vmatprep.subr.mxu0 0.0
    %1089 = vmatpush2.xpose.msra.mxu0 %v1028
    %1090 = vmatprep.subr.mxu0 0.0
    %1091 = vmatpush2.xpose.msra.mxu0 %v1027
    %1092 = vmatprep.subr.mxu0 0.0
    %1093 = vmatpush2.xpose.msra.mxu0 %v1026
    %1094 = vmatprep.subr.mxu0 0.0
    %1095 = vmatpush2.xpose.msra.mxu0 %v1025
    %1096 = vmatprep.subr.mxu0 0.0
    %1097 = vmatpush2.xpose.msra.mxu0 %v1024
    %1098 = vmatprep.subr.mxu0 0.0
    %1099 = vmatpush2.xpose.msra.mxu0 %v1023
    %1100 = vmatprep.subr.mxu0 0.0
    %1101 = vmatpush2.xpose.msra.mxu0 %v1022
    %1102 = vmatprep.subr.mxu0 0.0
    %1103 = vmatpush2.xpose.msra.mxu0 %v1021
    %1104 = vmatprep.subr.mxu0 0.0
    %1105 = vmatpush2.xpose.msra.mxu0 %v1020
    %1106 = vmatprep.subr.mxu0 0.0
    %1107 = vmatpush2.xpose.msra.mxu0 %v1019
    %1108 = vmatprep.mubr.f32.mxu0 0.0
    %1109 = vmatmul.mubr.f32.gmra.mxu0 %v1042
    %v1110 = vpop.f32.mrf.mxu0
    %v1111 = vadd.f32 %v1043, %v1110
    %v1112 = vpop.f32.mrf.mxu0
    %v1113 = vadd.f32 %v1043, %v1112
    %1114 = vdwg.mxu0
    %1115 = vmatprep.subr.mxu0 0.0
    %1116 = vmatpush1.xpose.msra.mxu0 0.0
    %1117 = vmatprep.subr.mxu0 0.0
    %1118 = vmatpush1.xpose.msra.mxu0 0.0
    %1119 = vmatprep.subr.mxu0 0.0
    %1120 = vmatpush1.xpose.msra.mxu0 0.0
    %1121 = vmatprep.subr.mxu0 0.0
    %1122 = vmatpush1.xpose.msra.mxu0 0.0
    %1123 = vmatprep.subr.mxu0 0.0
    %1124 = vmatpush1.xpose.msra.mxu0 0.0
    %1125 = vmatprep.subr.mxu0 0.0
    %1126 = vmatpush1.xpose.msra.mxu0 0.0
    %1127 = vmatprep.subr.mxu0 0.0
    %1128 = vmatpush1.xpose.msra.mxu0 0.0
    %1129 = vmatprep.subr.mxu0 0.0
    %1130 = vmatpush1.xpose.msra.mxu0 0.0
    %1131 = vmatprep.subr.mxu0 0.0
    %1132 = vmatpush1.xpose.msra.mxu0 0.0
    %1133 = vmatprep.subr.mxu0 0.0
    %1134 = vmatpush1.xpose.msra.mxu0 0.0
    %1135 = vmatprep.subr.mxu0 0.0
    %1136 = vmatpush1.xpose.msra.mxu0 %v1040
    %1137 = vmatprep.subr.mxu0 0.0
    %1138 = vmatpush1.xpose.msra.mxu0 %v1039
    %1139 = vmatprep.subr.mxu0 0.0
    %1140 = vmatpush1.xpose.msra.mxu0 %v1038
    %1141 = vmatprep.subr.mxu0 0.0
    %1142 = vmatpush1.xpose.msra.mxu0 %v1037
    %1143 = vmatprep.subr.mxu0 0.0
    %1144 = vmatpush1.xpose.msra.mxu0 %v1036
    %1145 = vmatprep.subr.mxu0 0.0
    %1146 = vmatpush1.xpose.msra.mxu0 %v1035
    %1147 = vmatprep.subr.mxu0 0.0
    %1148 = vmatpush2.xpose.msra.mxu0 0.0
    %1149 = vmatprep.subr.mxu0 0.0
    %1150 = vmatpush2.xpose.msra.mxu0 0.0
    %1151 = vmatprep.subr.mxu0 0.0
    %1152 = vmatpush2.xpose.msra.mxu0 0.0
    %1153 = vmatprep.subr.mxu0 0.0
    %1154 = vmatpush2.xpose.msra.mxu0 0.0
    %1155 = vmatprep.subr.mxu0 0.0
    %1156 = vmatpush2.xpose.msra.mxu0 0.0
    %1157 = vmatprep.subr.mxu0 0.0
    %1158 = vmatpush2.xpose.msra.mxu0 0.0
    %1159 = vmatprep.subr.mxu0 0.0
    %1160 = vmatpush2.xpose.msra.mxu0 0.0
    %1161 = vmatprep.subr.mxu0 0.0
    %1162 = vmatpush2.xpose.msra.mxu0 0.0
    %1163 = vmatprep.subr.mxu0 0.0
    %1164 = vmatpush2.xpose.msra.mxu0 0.0
    %1165 = vmatprep.subr.mxu0 0.0
    %1166 = vmatpush2.xpose.msra.mxu0 0.0
    %1167 = vmatprep.subr.mxu0 0.0
    %1168 = vmatpush2.xpose.msra.mxu0 0.0
    %1169 = vmatprep.subr.mxu0 0.0
    %1170 = vmatpush2.xpose.msra.mxu0 0.0
    %1171 = vmatprep.subr.mxu0 0.0
    %1172 = vmatpush2.xpose.msra.mxu0 0.0
    %1173 = vmatprep.subr.mxu0 0.0
    %1174 = vmatpush2.xpose.msra.mxu0 0.0
    %1175 = vmatprep.subr.mxu0 0.0
    %1176 = vmatpush2.xpose.msra.mxu0 0.0
    %1177 = vmatprep.subr.mxu0 0.0
    %1178 = vmatpush2.xpose.msra.mxu0 0.0
    %1179 = vmatprep.mubr.f32.mxu0 0.0
    %1180 = vmatmul.mubr.f32.gmra.mxu0 %v1042
    %v1181 = vpop.f32.mrf.mxu0
    %v1182 = vadd.f32 %v1043, %v1181
    %v1183 = vpop.f32.mrf.mxu0
    %1184 = vdwg.mxu0
    %v1185 = vld [vmem:[#allocation2] sm:$0x1]
    %vm1186 = vcmask 1040384
    %v1187 = vsel %vm1186, %v1111, -inf
    %v1188 = vsel %vm1186, %v1113, -inf
    %vm1189 = vcmask 352256
    %v1190 = vsel %vm1189, %v1182, -inf
    %v1191 = vmax.f32 %v1187, %v1188
    %v1192 = vmax.f32 %v1191, %v1190
    %1193 = vmax.xlane.f32.xlu0 %v1192
    %v1194 = vpop.xlane.xlu0 %1193
    %v1195 = vmax.f32 %v1185, %v1194
    %v1196 = vsub.f32 %v1185, %v1195
    %v1197 = vmul.f32 %v1196, 1.442695
    %v1198 = vpow.pop %v1197
    %1200 = vset.pattern.permute.xlu0 0
    %1201 = vperm.xlu0 %1200, %v1195
    %v1202 = vpop.permute.xlu0 %1201
    %v1204 = vlaneseq
    %v1205 = vshrl.u32 %v1204, 7
    %v1206 = vsub.s32 0, %v1205
    %v1207 = vrot.slane %v1202, %v1206
    %v1208 = vsub.f32 %v1111, %v1207
    %v1209 = vsub.f32 %v1113, %v1207
    %v1210 = vsub.f32 %v1182, %v1207
    %v1211 = vmul.f32 %v1208, 1.442695
    %v1212 = vpow.pop %v1211
    %v1213 = vmul.f32 %v1209, 1.442695
    %v1214 = vpow.pop %v1213
    %v1215 = vmul.f32 %v1210, 1.442695
    %v1216 = vpow.pop %v1215
    %v1217 = vld [vmem:[#allocation3] sm:$0x1]
    %v1218 = vmul.f32 %v1217, %v1198
    %v1219 = vsel %vm1186, %v1212, 0.0
    %v1220 = vsel %vm1186, %v1214, 0.0
    %v1221 = vadd.f32 %v1219, %v1220
    %v1222 = vsel %vm1189, %v1216, 0.0
    %v1223 = vadd.f32 %v1221, %v1222
    %1224 = vadd.xlane.f32.xlu0 %v1223
    %v1225 = vpop.xlane.xlu0 %1224
    %v1226 = vadd.f32 %v1218, %v1225
    %vm1227 = vcmask 0
    %1228 = vst.msk [vmem:[#allocation3] sm:$0x1] %vm1227, %v1226
    %v1229 = vld [vmem:[#allocation4] sm:$0x3]
    %1231 = vset.pattern.permute.xlu0 0
    %1232 = vperm.xlu0 %1231, %v1198
    %v1233 = vpop.permute.xlu0 %1232
    %v1235 = vlaneseq
    %v1236 = vshrl.u32 %v1235, 7
    %v1237 = vsub.s32 0, %v1236
    %v1238 = vrot.slane %v1233, %v1237
    %v1239 = vmul.f32 %v1229, %v1238
    %v1240 = vpack.c.bf16 %v1212, %v1212
    %v1241 = vpack.c.bf16 %v1214, %v1214
    %v1242 = vpack.c.bf16 %v1216, %v1216
    %vm1243 = vcmask 359424
    %v1245 = vsel %vm1243, %v1242, 0
    %vm1247 = vcmask 1045504
    %v1249 = vsel %vm1247, %v314, 0
    %v1252 = vsel %vm1247, %v315, 0
    %1254 = vmatprep.subr.bf16.mxu0 %v293
    %1255 = vmatpush1.bf16.msra.mxu0 %v292
    %1256 = vmatprep.subr.bf16.mxu0 %v291
    %1257 = vmatpush1.bf16.msra.mxu0 %v290
    %1258 = vmatprep.subr.bf16.mxu0 %v289
    %1259 = vmatpush1.bf16.msra.mxu0 %v288
    %1260 = vmatprep.subr.bf16.mxu0 %v287
    %1261 = vmatpush1.bf16.msra.mxu0 %v286
    %1262 = vmatprep.subr.bf16.mxu0 %v285
    %1263 = vmatpush1.bf16.msra.mxu0 %v284
    %1264 = vmatprep.subr.bf16.mxu0 %v283
    %1265 = vmatpush1.bf16.msra.mxu0 %v282
    %1266 = vmatprep.subr.bf16.mxu0 %v281
    %1267 = vmatpush1.bf16.msra.mxu0 %v280
    %1268 = vmatprep.subr.bf16.mxu0 %v279
    %1269 = vmatpush1.bf16.msra.mxu0 %v278
    %1270 = vmatprep.subr.bf16.mxu0 %v309
    %1271 = vmatpush2.bf16.msra.mxu0 %v308
    %1272 = vmatprep.subr.bf16.mxu0 %v307
    %1273 = vmatpush2.bf16.msra.mxu0 %v306
    %1274 = vmatprep.subr.bf16.mxu0 %v305
    %1275 = vmatpush2.bf16.msra.mxu0 %v304
    %1276 = vmatprep.subr.bf16.mxu0 %v303
    %1277 = vmatpush2.bf16.msra.mxu0 %v302
    %1278 = vmatprep.subr.bf16.mxu0 %v301
    %1279 = vmatpush2.bf16.msra.mxu0 %v300
    %1280 = vmatprep.subr.bf16.mxu0 %v299
    %1281 = vmatpush2.bf16.msra.mxu0 %v298
    %1282 = vmatprep.subr.bf16.mxu0 %v297
    %1283 = vmatpush2.bf16.msra.mxu0 %v296
    %1284 = vmatprep.subr.bf16.mxu0 %v295
    %1285 = vmatpush2.bf16.msra.mxu0 %v294
    %1286 = vmatprep.mubr.bf16.mxu0 %v1241
    %1287 = vmatmul.mubr.bf16.gmra.mxu0 %v1240
    %v1288 = vpop.f32.mrf.mxu0
    %v1289 = vadd.f32 0.0, %v1288
    %v1290 = vpop.f32.mrf.mxu0
    %v1291 = vadd.f32 0.0, %v1290
    %v1292 = vpop.f32.mrf.mxu0
    %v1293 = vpop.f32.mrf.mxu0
    %1294 = vdwg.mxu0
    %1295 = vmatprep.subr.bf16.mxu0 0
    %1296 = vmatpush1.bf16.msra.mxu0 0
    %1297 = vmatprep.subr.bf16.mxu0 0
    %1298 = vmatpush1.bf16.msra.mxu0 0
    %1299 = vmatprep.subr.bf16.mxu0 0
    %1300 = vmatpush1.bf16.msra.mxu0 0
    %1301 = vmatprep.subr.bf16.mxu0 0
    %1302 = vmatpush1.bf16.msra.mxu0 0
    %1303 = vmatprep.subr.bf16.mxu0 0
    %1304 = vmatpush1.bf16.msra.mxu0 0
    %1305 = vmatprep.subr.bf16.mxu0 %v1252
    %1306 = vmatpush1.bf16.msra.mxu0 %v1249
    %1307 = vmatprep.subr.bf16.mxu0 %v313
    %1308 = vmatpush1.bf16.msra.mxu0 %v312
    %1309 = vmatprep.subr.bf16.mxu0 %v311
    %1310 = vmatpush1.bf16.msra.mxu0 %v310
    %1311 = vmatprep.subr.bf16.mxu0 0
    %1312 = vmatpush2.bf16.msra.mxu0 0
    %1313 = vmatprep.subr.bf16.mxu0 0
    %1314 = vmatpush2.bf16.msra.mxu0 0
    %1315 = vmatprep.subr.bf16.mxu0 0
    %1316 = vmatpush2.bf16.msra.mxu0 0
    %1317 = vmatprep.subr.bf16.mxu0 0
    %1318 = vmatpush2.bf16.msra.mxu0 0
    %1319 = vmatprep.subr.bf16.mxu0 0
    %1320 = vmatpush2.bf16.msra.mxu0 0
    %1321 = vmatprep.subr.bf16.mxu0 0
    %1322 = vmatpush2.bf16.msra.mxu0 0
    %1323 = vmatprep.subr.bf16.mxu0 0
    %1324 = vmatpush2.bf16.msra.mxu0 0
    %1325 = vmatprep.subr.bf16.mxu0 0
    %1326 = vmatpush2.bf16.msra.mxu0 0
    %1327 = vmatprep.mubr.bf16.mxu0 0
    %1328 = vmatmul.mubr.bf16.gmra.mxu0 %v1245
    %v1329 = vpop.f32.mrf.mxu0
    %v1330 = vadd.f32 %v1289, %v1329
    %v1331 = vpop.f32.mrf.mxu0
    %v1332 = vadd.f32 %v1291, %v1331
    %v1333 = vpop.f32.mrf.mxu0
    %v1334 = vpop.f32.mrf.mxu0
    %1335 = vdwg.mxu0
    %v1338 = vcombine.low %v1330, %v1332
    %v1340 = vunpack.c.l.s4 1966171168
    %v1341 = vunpack.c.0.s8 %v1340
    %v1342 = vlaneseq
    %v1343 = vshrl.u32 %v1342, 7
    %v1344 = vsub.s32 %v1341, %v1343
    %v1345 = vrot.slane %v1338, %v1344
    %v1347 = vunpack.c.l.s4 1966171168
    %v1348 = vunpack.c.0.s8 %v1347
    %v1349 = vlaneseq
    %v1350 = vshrl.u32 %v1349, 7
    %v1351 = vsub.s32 %v1348, %v1350
    %v1352 = vrot.slane %v1345, %v1351
    %v1354 = vadd.f32 %v1239, %v1352
    %v1355 = vlaneseq
    %vm1356 = vcmp.ge.s32.totalorder %v1355, 0
    %vm1357 = vcmp.lt.s32.totalorder %v1355, 256
    %vm1358 = vmand %vm1356, %vm1357
    %1359 = vst.msk [vmem:[#allocation4] sm:$0x3] %vm1358, %v1354
    %1360 = vst.msk [vmem:[#allocation2] sm:$0x1] %vm1227, %v1195
    %v1364 = vcombine.low %v1212, %v1214
    %v1366 = vunpack.c.l.s4 1966171168
    %v1367 = vunpack.c.0.s8 %v1366
    %v1368 = vlaneseq
    %v1369 = vshrl.u32 %v1368, 7
    %v1370 = vsub.s32 %v1367, %v1369
    %v1371 = vrot.slane %v1364, %v1370
    %v1373 = vunpack.c.l.s4 1966171168
    %v1374 = vunpack.c.0.s8 %v1373
    %v1375 = vlaneseq
    %v1376 = vshrl.u32 %v1375, 7
    %v1377 = vsub.s32 %v1374, %v1376
    %v1378 = vrot.slane %v1216, %v1377
    %v1379 = vcombine.low %v1371, %v1378
    %v1381 = vunpack.c.l.s4 1966171168
    %v1382 = vunpack.c.0.s8 %v1381
    %v1383 = vlaneseq
    %v1384 = vshrl.u32 %v1383, 7
    %v1385 = vsub.s32 %v1382, %v1384
    %v1386 = vrot.slane %v1379, %v1385
    %s1388 = smul.u32 0, 3
    %s1389 = scalar_lea.vmem [#allocation13], %s1388
    %vm1390 = vcmp.lt.s32.totalorder %v1355, 300
    %vm1391 = vmand %vm1356, %vm1390
    %1392 = vst.msk [vmem:[%s1389] sm:$0x7] %vm1391, %v1386
    %1393 = vst.msk [vmem:[#allocation5] sm:$0x1] %vm1227, %v1195
    // Predicated region
    $region42: #{tpu_custom_call.1} parent=1 // pred_check
      %p1394 = pneg %p70
    $region43: #{tpu_custom_call.1} parent=1 // pred_check_branch
      %1396 = sbr.rel (%p1394) target = $region45
    $region44: #{tpu_custom_call.1} parent=1 // pred_region
      %v1397 = vld [vmem:[#allocation3] sm:$0x1]
      %v1398 = vrcp.pop %v1397
      %v1399 = vmul.f32 1.0, %v1398
      %v1400 = vld [vmem:[#allocation2] sm:$0x1]
      %v1401 = vld [vmem:[#allocation13] sm:$0x7]
      %v1402 = vld [vmem:[#allocation5] sm:$0x1]
      %v1403 = vsub.f32 %v1402, %v1400
      %v1404 = vmul.f32 %v1403, 1.442695
      %v1405 = vpow.pop %v1404
      %v1406 = vmul.f32 %v1405, %v1399
      %1408 = vset.pattern.permute.xlu0 0
      %1409 = vperm.xlu0 %1408, %v1406
      %v1410 = vpop.permute.xlu0 %1409
      %v1412 = vlaneseq
      %v1413 = vshrl.u32 %v1412, 7
      %v1414 = vsub.s32 0, %v1413
      %v1415 = vrot.slane %v1410, %v1414
      %v1416 = vmul.f32 %v1401, %v1415
      %1417 = vst.msk [vmem:[#allocation13] sm:$0x7] %vm1391, %v1416
      %v1418 = vld [vmem:[#allocation4] sm:$0x3]
      %1420 = vset.pattern.permute.xlu0 0
      %1421 = vperm.xlu0 %1420, %v1399
      %v1422 = vpop.permute.xlu0 %1421
      %v1424 = vlaneseq
      %v1425 = vshrl.u32 %v1424, 7
      %v1426 = vsub.s32 0, %v1425
      %v1427 = vrot.slane %v1422, %v1426
      %v1428 = vmul.f32 %v1418, %v1427
      %v1429 = vld [vmem:[%s4] sm:$0x3]
      %v1430 = vmul.f32 %v1428, %v1429
      %v1432 = vlaneseq
      %v1433 = vshrl.u32 %v1432, 7
      %v1434 = vsub.s32 0, %v1433
      %v1435 = vrot.slane %v1430, %v1434
      %v1436 = vlaneseq
      %v1437 = vshrl.u32 %v1436, 7
      %v1438 = vsub.s32 1, %v1437
      %v1439 = vrot.slane %v1430, %v1438
      %v1442 = vsel %vm1186, %v1435, 0.0
      %v1443 = vsel %vm1186, %v1439, 0.0
      %v1444 = vadd.f32 %v1442, %v1443
      %1445 = vadd.xlane.f32.xlu0 %v1444
      %v1446 = vpop.xlane.xlu0 %1445
      %s1447 = sld [smem:[#allocation12 + $0x1]]
      %v1448 = vstv %s1447
      %v1449 = vadd.f32 %v1446, %v1448
      %v1450 = vxor.u32 %v1449, 2147483648
      %v1451 = vmul.f32 %v1450, 1.442695
      %v1452 = vpow.pop %v1451
      %v1453 = vadd.f32 %v1452, 1.0
      %v1454 = vrcp.pop %v1453
      %v1455 = vmul.f32 1.0, %v1454
      %1456 = vst.msk [vmem:[#allocation14] sm:$0x1] %vm1227, %v1455
      %vm1457 = vcmp.ge.f32.partialorder %v1455, 0.5
      %v1458 = vsel %vm1457, 1, 0
      %v1459 = vcvt.s32.f32 %v1458
      %1460 = vst.msk [vmem:[#allocation16] sm:$0x1] %vm1227, %v1459
    $region45: #{tpu_custom_call.1} parent=1 // pred_fallthru
      _
    // Predicated region
    $region46: #{tpu_custom_call.1} parent=1 // pred_check
      _
    $region47: #{tpu_custom_call.1} parent=1 // pred_check_branch
      %1462 = sbr.rel (0) target = $region49
    $region48: #{tpu_custom_call.1} parent=1 // pred_region
      %s1464 = ssub.s32 48, 48
      %1465 = vsyncadd [#allocation8], %s1464
      %s1467 = sshll.u32 [#allocation13], 4
      %s1468 = int_to_ptr.vmem [resolvable:$true] %s1467
      %1470 = dma.vmem_to_hbm [thread:$0]  %s1468, 48, %s6, [#allocation8]
    $region49: #{tpu_custom_call.1} parent=1 // pred_fallthru
      _
    // Predicated region
    $region50: #{tpu_custom_call.1} parent=1 // pred_check
      _
    $region51: #{tpu_custom_call.1} parent=1 // pred_check_branch
      %1472 = sbr.rel (0) target = $region53
    $region52: #{tpu_custom_call.1} parent=1 // pred_region
      %s1474 = ssub.s32 16, 16
      %1475 = vsyncadd [#allocation15], %s1474
      %s1477 = sshll.u32 [#allocation14], 4
      %s1478 = int_to_ptr.vmem [resolvable:$true] %s1477
      %1480 = dma.vmem_to_hbm [thread:$0]  %s1478, 16, %s7, [#allocation15]
    $region53: #{tpu_custom_call.1} parent=1 // pred_fallthru
      _
    // Predicated region
    $region54: #{tpu_custom_call.1} parent=1 // pred_check
      _
    $region55: #{tpu_custom_call.1} parent=1 // pred_check_branch
      %1482 = sbr.rel (0) target = $region57
    $region56: #{tpu_custom_call.1} parent=1 // pred_region
      %s1484 = ssub.s32 16, 16
      %1485 = vsyncadd [#allocation15], %s1484
      %s1487 = sshll.u32 [#allocation16], 4
      %s1488 = int_to_ptr.vmem [resolvable:$true] %s1487
      %1490 = dma.vmem_to_hbm [thread:$0]  %s1488, 16, %s8, [#allocation15]
    $region57: #{tpu_custom_call.1} parent=1 // pred_fallthru
      _
    // Predicated region
    $region58: #{tpu_custom_call.1} parent=1 // pred_check
      _
    $region59: #{tpu_custom_call.1} parent=1 // pred_check_branch
      %1492 = sbr.rel (0) target = $region61
    $region60: #{tpu_custom_call.1} parent=1 // pred_region
      %1493 = dma.done [#allocation8], 48
    $region61: #{tpu_custom_call.1} parent=1 // pred_fallthru
      _
    // Predicated region
    $region62: #{tpu_custom_call.1} parent=1 // pred_check
      _
    $region63: #{tpu_custom_call.1} parent=1 // pred_check_branch
      %1495 = sbr.rel (0) target = $region65
    $region64: #{tpu_custom_call.1} parent=1 // pred_region
      %1496 = dma.done [#allocation15], 16
    $region65: #{tpu_custom_call.1} parent=1 // pred_fallthru
      _
    // Predicated region
    $region66: #{tpu_custom_call.1} parent=1 // pred_check
      _
    $region67: #{tpu_custom_call.1} parent=1 // pred_check_branch
      %1498 = sbr.rel (0) target = $region69
    $region68: #{tpu_custom_call.1} parent=1 // pred_region
      %1499 = dma.done [#allocation15], 16
    $region69: #{tpu_custom_call.1} parent=1 // pred_fallthru
      _
    %1500 = vsyncpa [#allocation7], 1
    %1501 = vsyncpa [#allocation11], 1
    %1502 = vsyncpa [#allocation8], 1
    %1503 = vsyncpa [#allocation15], 1
    %1504 = vsyncpa [#allocation9], 1

</llo_original>
